<compile_context>
chip_gen: v7x
topology: tpu7x:2x2x1
jax: 0.10.0
libtpu: 0.0.40
codegen_flags: <defaults>
</compile_context>

<pallas_src>
import functools

import numpy as np
import jax
import jax.numpy as jnp
from jax.experimental import pallas as pl
from jax.experimental.pallas import tpu as pltpu

_ACT_DTYPE = jnp.bfloat16       # inter-layer activation / matmul operand dtype


def _vmem_capacity_bytes():
    try:
        return int(pltpu.get_tpu_info().vmem_capacity_bytes)
    except Exception:
        return 64 * 1024 * 1024          # conservative fallback (v7x-sized)


_VMEM_CAP = _vmem_capacity_bytes()
_VMEM_LIMIT = max(min(_VMEM_CAP - 12 * 1024 * 1024, 110 * 1024 * 1024),
                  40 * 1024 * 1024)
_CONV3_BUDGET = min(_VMEM_CAP // 2, 64 * 1024 * 1024)


def _rup(x, m):
    return ((x + m - 1) // m) * m


def _apply_act(y, act):
    """Epilogue activation, kernel-internal (f32)."""
    if act == "mish":
        # mish(y) = y * tanh(softplus(y)) = y * e(e+2) / (e(e+2)+2), e = exp(y)
        e = jnp.exp(jnp.minimum(y, 20.0))
        num = e * (e + 2.0)
        return y * num * pl.reciprocal(num + 2.0, approx=True)
    if act == "leaky":
        return jnp.where(y > 0, y, 0.1 * y)
    return y  # "linear"


# ----------------------------------------------------------------------------
# Pallas kernels: tiled bf16 matmuls with fused bias + activation
# ----------------------------------------------------------------------------
def _make_mm1_kernel(act):
    # single-K-block matmul (no reduction grid, no accumulator scratch)
    def kernel(x_ref, w_ref, b_ref, o_ref):
        y = jnp.dot(x_ref[...], w_ref[...], preferred_element_type=jnp.float32)
        o_ref[...] = _apply_act(y + b_ref[...], act).astype(o_ref.dtype)
    return kernel


def _make_mm_kernel(act):
    # K-split matmul with VMEM accumulator
    def kernel(x_ref, w_ref, b_ref, o_ref, acc_ref):
        @pl.when(pl.program_id(2) == 0)
        def _():
            acc_ref[...] = jnp.zeros_like(acc_ref)

        acc_ref[...] += jnp.dot(x_ref[...], w_ref[...],
                                preferred_element_type=jnp.float32)

        @pl.when(pl.program_id(2) == pl.num_programs(2) - 1)
        def _():
            o_ref[...] = _apply_act(acc_ref[...] + b_ref[...],
                                    act).astype(o_ref.dtype)
    return kernel


def _make_mmcat_kernel(nseg, act):
    # split-K matmul over nseg input segments (fused concat + 1x1 conv)
    def kernel(*refs):
        xs = refs[:nseg]
        ws = refs[nseg:2 * nseg]
        b_ref = refs[2 * nseg]
        o_ref = refs[2 * nseg + 1]
        y = jnp.dot(xs[0][...], ws[0][...], preferred_element_type=jnp.float32)
        for i in range(1, nseg):
            y = y + jnp.dot(xs[i][...], ws[i][...],
                            preferred_element_type=jnp.float32)
        o_ref[...] = _apply_act(y + b_ref[...], act).astype(o_ref.dtype)
    return kernel


def _pick_tn(n):
    if n % 128 == 0:
        for cand in (512, 256, 128):
            if n % cand == 0:
                return min(cand, n)
    return n  # full (unpadded) channel block for 32/64/255


@functools.partial(jax.jit, static_argnames=("act", "out_dtype"))
def matmul_bias_act(x, w, b, *, act, out_dtype=_ACT_DTYPE):
    """x: (M, K), w: (K, N), b: (N,) -> (M, N) with fused bias + activation."""
    M, K = x.shape
    N = w.shape[1]
    tm = min(512, _rup(M, 8))
    tn = _pick_tn(N)
    Mp = _rup(M, tm)

    xp = x.astype(_ACT_DTYPE)
    wp = w.astype(_ACT_DTYPE)
    bp = b.reshape(1, -1).astype(jnp.float32)
    if Mp != M:
        xp = jnp.pad(xp, ((0, Mp - M), (0, 0)))

    if K <= 1536:
        out = pl.pallas_call(
            _make_mm1_kernel(act),
            out_shape=jax.ShapeDtypeStruct((Mp, N), out_dtype),
            grid_spec=pltpu.PrefetchScalarGridSpec(
                num_scalar_prefetch=0,
                grid=(Mp // tm, N // tn),
                in_specs=[
                    pl.BlockSpec((tm, K), lambda i, j: (i, 0)),
                    pl.BlockSpec((K, tn), lambda i, j: (0, j)),
                    pl.BlockSpec((1, tn), lambda i, j: (0, j)),
                ],
                out_specs=pl.BlockSpec((tm, tn), lambda i, j: (i, j)),
            ),
            compiler_params=pltpu.CompilerParams(
                dimension_semantics=("parallel", "parallel"),
                vmem_limit_bytes=_VMEM_LIMIT,
            ),
        )(xp, wp, bp)
    else:
        Kp = _rup(K, 128)
        tk = 128
        for cand in (2048, 1536, 1280, 1024, 896, 768, 640, 512, 384, 256, 128):
            if Kp % cand == 0:
                tk = cand
                break
        if Kp != K:
            xp = jnp.pad(xp, ((0, 0), (0, Kp - K)))
            wp = jnp.pad(wp, ((0, Kp - K), (0, 0)))
        out = pl.pallas_call(
            _make_mm_kernel(act),
            out_shape=jax.ShapeDtypeStruct((Mp, N), out_dtype),
            grid_spec=pltpu.PrefetchScalarGridSpec(
                num_scalar_prefetch=0,
                grid=(Mp // tm, N // tn, Kp // tk),
                in_specs=[
                    pl.BlockSpec((tm, tk), lambda i, j, k: (i, k)),
                    pl.BlockSpec((tk, tn), lambda i, j, k: (k, j)),
                    pl.BlockSpec((1, tn), lambda i, j, k: (0, j)),
                ],
                out_specs=pl.BlockSpec((tm, tn), lambda i, j, k: (i, j)),
                scratch_shapes=[pltpu.VMEM((tm, tn), jnp.float32)],
            ),
            compiler_params=pltpu.CompilerParams(
                dimension_semantics=("parallel", "parallel", "arbitrary"),
                vmem_limit_bytes=_VMEM_LIMIT,
            ),
        )(xp, wp, bp)

    if Mp != M:
        out = out[:M]
    return out


@functools.partial(jax.jit, static_argnames=("act", "out_dtype"))
def matmul_cat_bias_act(xs, ws, b, *, act, out_dtype=_ACT_DTYPE):
    """Fused concat + matmul: out = act(sum_i xs[i] @ ws[i] + b)."""
    nseg = len(xs)
    M = xs[0].shape[0]
    N = ws[0].shape[1]
    tm = min(512, _rup(M, 8))
    tn = _pick_tn(N)
    Mp = _rup(M, tm)

    xs_p, ws_p, in_specs = [], [], []
    for xseg in xs:
        xp = xseg.astype(_ACT_DTYPE)
        if Mp != M:
            xp = jnp.pad(xp, ((0, Mp - M), (0, 0)))
        xs_p.append(xp)
        in_specs.append(pl.BlockSpec((tm, xseg.shape[1]), lambda i, j: (i, 0)))
    for wseg in ws:
        ws_p.append(wseg.astype(_ACT_DTYPE))
        in_specs.append(pl.BlockSpec((wseg.shape[0], tn), lambda i, j: (0, j)))
    in_specs.append(pl.BlockSpec((1, tn), lambda i, j: (0, j)))
    bp = b.reshape(1, -1).astype(jnp.float32)

    out = pl.pallas_call(
        _make_mmcat_kernel(nseg, act),
        out_shape=jax.ShapeDtypeStruct((Mp, N), out_dtype),
        grid_spec=pltpu.PrefetchScalarGridSpec(
            num_scalar_prefetch=0,
            grid=(Mp // tm, N // tn),
            in_specs=in_specs,
            out_specs=pl.BlockSpec((tm, tn), lambda i, j: (i, j)),
        ),
        compiler_params=pltpu.CompilerParams(
            dimension_semantics=("parallel", "parallel"),
            vmem_limit_bytes=_VMEM_LIMIT,
        ),
    )(*xs_p, *ws_p, bp)
    if Mp != M:
        out = out[:M]
    return out


# ----------------------------------------------------------------------------
# Fused 3x3 stride-1 conv (manual slab DMA, VMEM accumulator, NHWC output,
# optional fused residual add)
# ----------------------------------------------------------------------------
def _make_conv3_kernel(act, th, W, Wp, tn, aligned, has_res):
    Mt = th * Wp
    Rows = Mt + 2 * Wp
    Ls = Rows + 2

    def kernel(*refs):
        x_hbm, w_ref, b_ref = refs[0], refs[1], refs[2]
        idx = 3
        res_ref = None
        if has_res:
            res_ref = refs[idx]
            idx += 1
        o_ref = refs[idx]
        slab = refs[idx + 1]
        idx += 2
        shift = None
        if aligned:
            shift = refs[idx]
            idx += 1
        acc = refs[idx]
        sem = refs[idx + 1]

        n = pl.program_id(1)
        r = pl.program_id(2)

        # DMA the row slab (with halo) of the zero-padded, row-flattened image.
        cp = pltpu.make_async_copy(x_hbm.at[n, pl.ds(r * Mt, Ls), :], slab, sem)
        cp.start()
        cp.wait()

        if aligned:
            # pre-shift once for dx in {1, 2}; all dy*Wp offsets stay 16-aligned
            shift[0, :, :] = slab[1:1 + Rows, :]
            shift[1, :, :] = slab[2:2 + Rows, :]

        first = True
        for dy in range(3):
            for dx in range(3):
                if aligned and dx > 0:
                    patch = shift[dx - 1, dy * Wp:dy * Wp + Mt, :]
                else:
                    off = dy * Wp + dx
                    patch = slab[off:off + Mt, :]
                contrib = jnp.dot(patch, w_ref[dy, dx],
                                  preferred_element_type=jnp.float32)
                if first:
                    acc[...] = contrib
                    first = False
                else:
                    acc[...] += contrib

        y = acc[...].reshape(th, Wp, tn)[:, :W, :] + b_ref[...]
        y = _apply_act(y, act)
        if has_res:
            y = y + res_ref[0].astype(jnp.float32)
        o_ref[0] = y.astype(o_ref.dtype)

    return kernel


def _pick_row_tile(H, W, Wp, C, tn, budget):
    """Largest divisor of H whose per-step VMEM footprint fits the budget."""
    for th in range(H, 0, -1):
        if H % th:
            continue
        Mt = th * Wp
        Rows = Mt + 2 * Wp
        Ls = Rows + 2
        vmem = (Ls * C * 2                    # slab (bf16)
                + 2 * Rows * C * 2            # dx-shift scratch (bf16)
                + Mt * tn * 4                 # f32 accumulator
                + 4 * th * W * tn * 2         # out + residual blocks (dbuf, bf16)
                + 2 * 9 * C * tn * 2          # weight block (dbuf, bf16)
                + 8 * tn)
        if vmem <= budget:
            return th
    return 1


@functools.partial(jax.jit, static_argnames=("act",))
def _conv3x3_s1(x, w, b, res, *, act):
    """3x3 stride-1 'same' conv in NHWC with optional fused residual add."""
    N, H, W, C = x.shape
    cout = w.shape[0]
    has_res = res is not None

    if cout % 128 == 0:
        tn = 256 if cout % 256 == 0 else 128
    else:
        tn = cout
    ncb = cout // tn

    w16 = _rup(W + 2, 16)
    aligned = (w16 * 100) <= ((W + 2) * 145)      # keep pad waste <= ~45%
    Wp = w16 if aligned else (W + 2)

    th = _pick_row_tile(H, W, Wp, C, tn, _CONV3_BUDGET)
    nt = H // th
    Mt = th * Wp
    Rows = Mt + 2 * Wp
    Ls = Rows + 2

    # zero-padded input, flattened row-major over (padded rows, padded cols)
    xp = jnp.pad(x.astype(_ACT_DTYPE),
                 ((0, 0), (1, 2), (1, Wp - W - 1), (0, 0)))
    flat = xp.reshape(N, (H + 3) * Wp, C)

    wt = jnp.transpose(w, (2, 3, 1, 0)).astype(_ACT_DTYPE)   # (3, 3, Cin, Cout)
    bp = b.reshape(1, -1).astype(jnp.float32)

    in_specs = [
        pl.BlockSpec(memory_space=pl.ANY),                        # flat stays in HBM
        pl.BlockSpec((3, 3, C, tn), lambda j, n, r: (0, 0, 0, j)),
        pl.BlockSpec((1, tn), lambda j, n, r: (0, j)),
    ]
    args = [flat, wt, bp]
    if has_res:
        in_specs.append(pl.BlockSpec((1, th, W, tn),
                                     lambda j, n, r: (n, r, 0, j)))
        args.append(res.astype(_ACT_DTYPE))

    scratch = [pltpu.VMEM((Ls, C), _ACT_DTYPE)]
    if aligned:
        scratch.append(pltpu.VMEM((2, Rows, C), _ACT_DTYPE))
    scratch += [pltpu.VMEM((Mt, tn), jnp.float32),
                pltpu.SemaphoreType.DMA(())]

    out = pl.pallas_call(
        _make_conv3_kernel(act, th, W, Wp, tn, aligned, has_res),
        out_shape=jax.ShapeDtypeStruct((N, H, W, cout), _ACT_DTYPE),
        grid_spec=pltpu.PrefetchScalarGridSpec(
            num_scalar_prefetch=0,
            grid=(ncb, N, nt),
            in_specs=in_specs,
            out_specs=pl.BlockSpec((1, th, W, tn), lambda j, n, r: (n, r, 0, j)),
            scratch_shapes=scratch,
        ),
        compiler_params=pltpu.CompilerParams(
            dimension_semantics=("parallel", "parallel", "parallel"),
            vmem_limit_bytes=_VMEM_LIMIT,
        ),
    )(*args)
    return out


# ----------------------------------------------------------------------------
# SPP (5/9/13 stride-1 max pools), hierarchical & separable, one gridded kernel
# ----------------------------------------------------------------------------
def _spp_kernel(x_ref, o13_ref, o9_ref, o5_ref):
    x = x_ref[0]                           # (H+12, W+12, ct)
    Hp, Wp, _ = x.shape
    H, W = Hp - 12, Wp - 12

    # column (width) pools: 5, then 9 from 5, then 13 from 9
    c5 = x[:, 0:Wp - 4]
    for d in range(1, 5):
        c5 = jnp.maximum(c5, x[:, d:Wp - 4 + d])
    c9 = jnp.maximum(c5[:, 0:Wp - 8], c5[:, 4:Wp - 4])
    c13 = jnp.maximum(c9[:, 0:Wp - 12], c9[:, 4:Wp - 8])

    def rowpool5(a):
        n = a.shape[0]
        r = a[0:n - 4]
        for d in range(1, 5):
            r = jnp.maximum(r, a[d:n - 4 + d])
        return r

    r5 = rowpool5(c5)                                   # (Hp-4, Wp-4, ct)
    o5_ref[0] = r5[4:4 + H, 4:4 + W]

    r9c = rowpool5(c9)                                  # (Hp-4, Wp-8, ct)
    r9 = jnp.maximum(r9c[0:Hp - 8], r9c[4:Hp - 4])      # (Hp-8, Wp-8, ct)
    o9_ref[0] = r9[2:2 + H, 2:2 + W]

    r13c = rowpool5(c13)                                # (Hp-4, W, ct)
    r13b = jnp.maximum(r13c[0:Hp - 8], r13c[4:Hp - 4])  # (Hp-8, W, ct)
    o13_ref[0] = jnp.maximum(r13b[0:H], r13b[4:4 + H])


@jax.jit
def spp_pool(x):
    """Returns [maxpool13, maxpool9, maxpool5, x] (list of NHWC tensors)."""
    N, H, W, C = x.shape
    ct = 128 if C % 128 == 0 else C
    xp = jnp.pad(x, ((0, 0), (6, 6), (6, 6), (0, 0)),
                 constant_values=float("-inf"))
    m13, m9, m5 = pl.pallas_call(
        _spp_kernel,
        out_shape=tuple(jax.ShapeDtypeStruct((N, H, W, C), x.dtype)
                        for _ in range(3)),
        grid_spec=pltpu.PrefetchScalarGridSpec(
            num_scalar_prefetch=0,
            grid=(N, C // ct),
            in_specs=[pl.BlockSpec((1, H + 12, W + 12, ct),
                                   lambda n, c: (n, 0, 0, c))],
            out_specs=tuple(pl.BlockSpec((1, H, W, ct),
                                         lambda n, c: (n, 0, 0, c))
                            for _ in range(3)),
        ),
        compiler_params=pltpu.CompilerParams(
            dimension_semantics=("parallel", "parallel"),
            vmem_limit_bytes=_VMEM_LIMIT,
        ),
    )(xp)
    return [m13, m9, m5, x]


# ----------------------------------------------------------------------------
# YOLO head decode (grid offsets via in-kernel iota, static anchors/stride)
# ----------------------------------------------------------------------------
def _make_decode_kernel(stride, anchors, no):
    def kernel(x_ref, o_ref):
        a = pl.program_id(1)
        x = x_ref[0].astype(jnp.float32)                    # (H, W, no)
        shp = x.shape
        col = jax.lax.broadcasted_iota(jnp.int32, shp, 2)
        gx = jax.lax.broadcasted_iota(jnp.int32, shp, 1).astype(jnp.float32)
        gy = jax.lax.broadcasted_iota(jnp.int32, shp, 0).astype(jnp.float32)
        aw = jnp.where(a == 0, anchors[0][0],
                       jnp.where(a == 1, anchors[1][0], anchors[2][0]))
        ah = jnp.where(a == 0, anchors[0][1],
                       jnp.where(a == 1, anchors[1][1], anchors[2][1]))
        is_wh = jnp.logical_and(col >= 2, col < 4)
        s = jax.nn.sigmoid(x)
        e = jnp.exp(jnp.where(is_wh, x, 0.0))               # exp only on wh lanes
        grid_v = jnp.where(col == 0, gx, gy)
        anch_v = jnp.where(col == 2, aw, ah)
        out = jnp.where(col < 2, (s + grid_v) * stride,
                        jnp.where(is_wh, e * anch_v, s))
        o_ref[0] = out.astype(jnp.float32)
    return kernel


@functools.partial(jax.jit, static_argnames=("anchors", "stride", "num_classes"))
def yolo_decode(raw, *, anchors, stride, num_classes=80):
    """raw: (N, H, W, 3*(5+nc)) f32 -> decoded (N, 3, H, W, 5+nc) f32."""
    no = 5 + num_classes
    N, H, W, _ = raw.shape
    x = raw.reshape(N, H, W, 3, no).transpose(0, 3, 1, 2, 4)
    x = x.reshape(N * 3, H, W, no).astype(jnp.float32)
    out = pl.pallas_call(
        _make_decode_kernel(float(stride), anchors, no),
        out_shape=jax.ShapeDtypeStruct((N * 3, H, W, no), jnp.float32),
        grid_spec=pltpu.PrefetchScalarGridSpec(
            num_scalar_prefetch=0,
            grid=(N, 3),
            in_specs=[pl.BlockSpec((1, H, W, no),
                                   lambda n, a: (n * 3 + a, 0, 0, 0))],
            out_specs=pl.BlockSpec((1, H, W, no),
                                   lambda n, a: (n * 3 + a, 0, 0, 0)),
        ),
        compiler_params=pltpu.CompilerParams(
            dimension_semantics=("parallel", "parallel"),
            vmem_limit_bytes=_VMEM_LIMIT,
        ),
    )(x)
    return out.reshape(N, 3, H, W, no)


# ----------------------------------------------------------------------------
# Convolution dispatcher (1x1 direct / fused 3x3 s1 / im2col fallback)
# ----------------------------------------------------------------------------
def _im2col(x, kh, kw, stride, pad):
    N, H, W, C = x.shape
    Ho = (H + 2 * pad - kh) // stride + 1
    Wo = (W + 2 * pad - kw) // stride + 1
    xp = jnp.pad(x, ((0, 0), (pad, pad), (pad, pad), (0, 0)))
    cols = []
    for dy in range(kh):
        for dx in range(kw):
            cols.append(
                xp[:, dy:dy + stride * (Ho - 1) + 1:stride,
                      dx:dx + stride * (Wo - 1) + 1:stride, :]
            )
    patches = jnp.stack(cols, axis=3)            # (N, Ho, Wo, kh*kw, C)
    return patches.reshape(N * Ho * Wo, kh * kw * C), Ho, Wo


def conv2d(x, w, b, stride, act, residual=None, out_dtype=_ACT_DTYPE):
    """x: NHWC bf16, w: (Cout, Cin, kh, kw) (PyTorch layout), 'same' pad k//2."""
    cout, cin, kh, kw = w.shape
    assert x.shape[-1] == cin
    N, H, W, _ = x.shape
    if kh == 1 and kw == 1 and stride == 1:
        w2 = jnp.transpose(w, (2, 3, 1, 0)).reshape(cin, cout)
        y = matmul_bias_act(x.reshape(N * H * W, cin), w2, b,
                            act=act, out_dtype=out_dtype)
        y = y.reshape(N, H, W, cout)
        if residual is not None:
            y = y + residual
        return y
    if kh == 3 and kw == 3 and stride == 1 and cin >= 8:
        return _conv3x3_s1(x, w, b, residual, act=act)
    # TODO(synk): strided 3x3 convs (and the 3-channel stem conv) still use an
    # HBM im2col patch matrix (~2.25x inflation at stride 2).
    pad = kh // 2
    patches, Ho, Wo = _im2col(x, kh, kw, stride, pad)
    w2 = jnp.transpose(w, (2, 3, 1, 0)).reshape(kh * kw * cin, cout)
    y = matmul_bias_act(patches, w2, b, act=act, out_dtype=out_dtype)
    y = y.reshape(N, Ho, Wo, cout)
    if residual is not None:
        y = y + residual
    return y


def upsample2x(x):
    N, H, W, C = x.shape
    y = jnp.broadcast_to(x[:, :, None, :, None, :], (N, H, 2, W, 2, C))
    return y.reshape(N, 2 * H, 2 * W, C)


# ----------------------------------------------------------------------------
# Deterministic parameter generation (BN folded; inference semantics)
# ----------------------------------------------------------------------------
class ParamGen:
    def __init__(self, seed):
        self.key = jax.random.PRNGKey(seed)
        self.i = 0

    def next(self, shape, scale):
        k = jax.random.fold_in(self.key, self.i)
        self.i += 1
        return jax.random.normal(k, shape, jnp.float32) * scale


def conv_layer(pg, x, cout, k, s, act, residual=None):
    cin = x.shape[-1]
    w = pg.next((cout, cin, k, k), 1.0 / np.sqrt(cin * k * k))
    if act == "linear":      # head conv: real bias, no BN, f32 output
        b = pg.next((cout,), 0.01)
        out_dtype = jnp.float32
    else:                    # Conv + (folded) BN + activation -> zero bias
        b = jnp.zeros((cout,), jnp.float32)
        out_dtype = _ACT_DTYPE
    return conv2d(x, w, b, s, act, residual=residual, out_dtype=out_dtype)


def conv1x1_cat(pg, xs, cout, act):
    """Fused concat(xs, channel) + 1x1 conv + BN + act."""
    cins = [int(t.shape[-1]) for t in xs]
    ctot = sum(cins)
    w = pg.next((cout, ctot, 1, 1), 1.0 / np.sqrt(ctot))
    b = jnp.zeros((cout,), jnp.float32)
    w2 = jnp.transpose(w, (2, 3, 1, 0)).reshape(ctot, cout)
    ws, off = [], 0
    for ci in cins:
        ws.append(w2[off:off + ci])
        off += ci
    N, H, W, _ = xs[0].shape
    M = N * H * W
    xs2 = tuple(t.reshape(M, t.shape[-1]) for t in xs)
    y = matmul_cat_bias_act(xs2, tuple(ws), b, act=act)
    return y.reshape(N, H, W, cout)


# ----------------------------------------------------------------------------
# CSPDarknet53 backbone
# ----------------------------------------------------------------------------
def csp_stage(pg, x, cout, nblocks, first):
    x = conv_layer(pg, x, cout, 3, 2, "mish")
    half = cout if first else cout // 2
    route = conv_layer(pg, x, half, 1, 1, "mish")
    x = conv_layer(pg, x, half, 1, 1, "mish")
    for _ in range(nblocks):
        y = conv_layer(pg, x, cout // 2, 1, 1, "mish")
        # residual add fused into the 3x3 conv epilogue
        x = conv_layer(pg, y, half, 3, 1, "mish", residual=x)
    x = conv_layer(pg, x, half, 1, 1, "mish")
    x = conv1x1_cat(pg, [x, route], cout, "mish")
    return x


def backbone(pg, x):
    x = conv_layer(pg, x, 32, 3, 1, "mish")
    x = csp_stage(pg, x, 64, 1, True)
    x = csp_stage(pg, x, 128, 2, False)
    d3 = x = csp_stage(pg, x, 256, 8, False)
    d4 = x = csp_stage(pg, x, 512, 8, False)
    d5 = csp_stage(pg, x, 1024, 4, False)
    return d3, d4, d5


# ----------------------------------------------------------------------------
# PANet neck (with SPP)
# ----------------------------------------------------------------------------
def five_convs(pg, xs, c):
    x = conv1x1_cat(pg, xs, c, "leaky")
    x = conv_layer(pg, x, 2 * c, 3, 1, "leaky")
    x = conv_layer(pg, x, c, 1, 1, "leaky")
    x = conv_layer(pg, x, 2 * c, 3, 1, "leaky")
    x = conv_layer(pg, x, c, 1, 1, "leaky")
    return x


def neck(pg, d3, d4, d5):
    # SPP on the stride-32 feature
    x = conv_layer(pg, d5, 512, 1, 1, "leaky")
    x = conv_layer(pg, x, 1024, 3, 1, "leaky")
    x = conv_layer(pg, x, 512, 1, 1, "leaky")
    spp = spp_pool(x)                          # [pool13, pool9, pool5, x]
    x = conv1x1_cat(pg, spp, 512, "leaky")
    x = conv_layer(pg, x, 1024, 3, 1, "leaky")
    p5 = conv_layer(pg, x, 512, 1, 1, "leaky")

    # top-down to stride 16
    up = upsample2x(conv_layer(pg, p5, 256, 1, 1, "leaky"))
    l4 = conv_layer(pg, d4, 256, 1, 1, "leaky")
    p4 = five_convs(pg, [l4, up], 256)

    # top-down to stride 8
    up = upsample2x(conv_layer(pg, p4, 128, 1, 1, "leaky"))
    l3 = conv_layer(pg, d3, 128, 1, 1, "leaky")
    p3 = five_convs(pg, [l3, up], 128)

    # bottom-up PAN path + channel-expansion convs feeding the heads
    c3 = conv_layer(pg, p3, 256, 3, 1, "leaky")

    down = conv_layer(pg, p3, 256, 3, 2, "leaky")
    n4 = five_convs(pg, [down, p4], 256)
    c4 = conv_layer(pg, n4, 512, 3, 1, "leaky")

    down = conv_layer(pg, n4, 512, 3, 2, "leaky")
    n5 = five_convs(pg, [down, p5], 512)
    c5 = conv_layer(pg, n5, 1024, 3, 1, "leaky")

    return c5, c4, c3


# ----------------------------------------------------------------------------
# YOLO head: 1x1 conv to 3*(5+nc) channels (f32) + anchor/grid decode
# ----------------------------------------------------------------------------
def yolo_head(pg, feat, anchors_row, stride, num_classes=80):
    no = 5 + num_classes
    raw = conv_layer(pg, feat, 3 * no, 1, 1, "linear")
    anchors_t = tuple((float(aw), float(ah)) for aw, ah in np.asarray(anchors_row))
    return yolo_decode(raw, anchors=anchors_t, stride=float(stride),
                       num_classes=num_classes)


# ----------------------------------------------------------------------------
# Full model
# ----------------------------------------------------------------------------
def yolov4_forward(x_nchw, seed=0):
    anchors = np.array(
        [[(12, 16), (19, 36), (40, 28)],
         [(36, 75), (76, 55), (72, 146)],
         [(142, 110), (192, 243), (459, 401)]], np.float32)
    strides = [8, 16, 32]
    pg = ParamGen(seed)

    x = jnp.transpose(x_nchw, (0, 2, 3, 1)).astype(_ACT_DTYPE)   # NCHW -> NHWC bf16
    d3, d4, d5 = backbone(pg, x)
    c5, c4, c3 = neck(pg, d3, d4, d5)
    out3 = yolo_head(pg, c3, anchors[0], strides[0])
    out4 = yolo_head(pg, c4, anchors[1], strides[1])
    out5 = yolo_head(pg, c5, anchors[2], strides[2])
    return out3, out4, out5


if __name__ == "__main__":
    key = jax.random.PRNGKey(0)
    # small input: batch=2, 3 channels, 64x64 (must be divisible by 32)
    x = jax.random.normal(key, (2, 3, 64, 64), jnp.float32)

    c3, c4, c5 = yolov4_forward(x, seed=0)
    jax.block_until_ready((c3, c4, c5))

    assert c3.shape == (2, 3, 8, 8, 85), c3.shape
    assert c4.shape == (2, 3, 4, 4, 85), c4.shape
    assert c5.shape == (2, 3, 2, 2, 85), c5.shape
    assert bool(jnp.isfinite(c3).all() & jnp.isfinite(c4).all() & jnp.isfinite(c5).all())

    print("KERNEL_OK")
</pallas_src>

<mosaic_0001>
module attributes {stable_mosaic.version = 11 : i64} {
  func.func @kernel(%arg0: i32, %arg1: i32, %arg2: memref<512x27xbf16, #tpu.memory_space<vmem>>, %arg3: memref<27x32xbf16, #tpu.memory_space<vmem>>, %arg4: memref<1x32xf32, #tpu.memory_space<vmem>>, %arg5: memref<512x32xbf16, #tpu.memory_space<vmem>>) attributes {dimension_semantics = [#tpu.dimension_semantics<parallel>, #tpu.dimension_semantics<parallel>], iteration_bounds = array<i64: 16, 1>, scalar_prefetch = 0 : i64, scratch_operands = 0 : i64, tpu.core_type = #tpu.core_type<tc>, window_params = [{transform_indices = @transform_0, window_bounds = array<i64: 512, 27>}, {transform_indices = @transform_1, window_bounds = array<i64: 27, 32>}, {transform_indices = @transform_2, window_bounds = array<i64: 1, 32>}, {transform_indices = @transform_3, window_bounds = array<i64: 512, 32>}]} {
    %c0 = arith.constant 0 : index
    %c0_0 = arith.constant 0 : index
    %0 = vector.load %arg2[%c0, %c0_0] : memref<512x27xbf16, #tpu.memory_space<vmem>>, vector<512x27xbf16>
    %c0_1 = arith.constant 0 : index
    %c0_2 = arith.constant 0 : index
    %1 = vector.load %arg3[%c0_1, %c0_2] : memref<27x32xbf16, #tpu.memory_space<vmem>>, vector<27x32xbf16>
    %cst = arith.constant dense<0.000000e+00> : vector<512x32xf32>
    %2 = tpu.matmul %0, %1, %cst {dimension_numbers = #tpu.dot_dimension_numbers<[1], [0], [0], [1], [0, 0, 1, 1], [], []>} : vector<512x27xbf16>, vector<27x32xbf16>, vector<512x32xf32> -> vector<512x32xf32>
    %c0_3 = arith.constant 0 : index
    %c0_4 = arith.constant 0 : index
    %3 = vector.load %arg4[%c0_3, %c0_4] : memref<1x32xf32, #tpu.memory_space<vmem>>, vector<1x32xf32>
    %4 = vector.broadcast %3 : vector<1x32xf32> to vector<512x32xf32>
    %5 = arith.addf %2, %4 : vector<512x32xf32>
    %cst_5 = arith.constant 2.000000e+01 : f32
    %6 = vector.broadcast %cst_5 : f32 to vector<512x32xf32>
    %7 = arith.minimumf %5, %6 : vector<512x32xf32>
    %8 = math.exp %7 : vector<512x32xf32>
    %cst_6 = arith.constant 2.000000e+00 : f32
    %9 = vector.broadcast %cst_6 : f32 to vector<512x32xf32>
    %10 = arith.addf %8, %9 : vector<512x32xf32>
    %11 = arith.mulf %8, %10 : vector<512x32xf32>
    %12 = arith.mulf %5, %11 : vector<512x32xf32>
    %cst_7 = arith.constant 2.000000e+00 : f32
    %13 = vector.broadcast %cst_7 : f32 to vector<512x32xf32>
    %14 = arith.addf %11, %13 : vector<512x32xf32>
    %15 = tpu.reciprocal %14 {approx = true} : vector<512x32xf32> -> vector<512x32xf32>
    %16 = arith.mulf %12, %15 : vector<512x32xf32>
    %17 = arith.truncf %16 : vector<512x32xf32> to vector<512x32xbf16>
    %c0_8 = arith.constant 0 : index
    %c0_9 = arith.constant 0 : index
    %18 = vector.load %arg5[%c0_8, %c0_9] : memref<512x32xbf16, #tpu.memory_space<vmem>>, vector<512x32xbf16>
    tpu.vector_store %arg5[%c0_8, %c0_9], %17 {strides = array<i32>} : memref<512x32xbf16, #tpu.memory_space<vmem>>, vector<512x32xbf16>,
    return
  }
  func.func @transform_0(%arg0: i32, %arg1: i32) -> (i32, i32) {
    %c0_i32 = arith.constant 0 : i32
    %c0_i32_0 = arith.constant 0 : i32
    return %arg0, %c0_i32 : i32, i32
  }
  func.func @transform_1(%arg0: i32, %arg1: i32) -> (i32, i32) {
    %c0_i32 = arith.constant 0 : i32
    %c0_i32_0 = arith.constant 0 : i32
    return %c0_i32, %arg1 : i32, i32
  }
  func.func @transform_2(%arg0: i32, %arg1: i32) -> (i32, i32) {
    %c0_i32 = arith.constant 0 : i32
    %c0_i32_0 = arith.constant 0 : i32
    return %c0_i32, %arg1 : i32, i32
  }
  func.func @transform_3(%arg0: i32, %arg1: i32) -> (i32, i32) {
    %c0_i32 = arith.constant 0 : i32
    return %arg0, %arg1 : i32, i32
  }
}

</mosaic_0001>

<llo_original>
// kernel: matmul_bias_act.1
$region0: #{matmul_bias_act.1}
  #allocation0 [shape = 'u32[]', space=smem, size = 0x4, offset = 0x4, fixed_abs, tag = 'smem constant byte address 0x4 - core index']
  #allocation1 [shape = 'u32[144,128]{1,0:T(1,128)}', space=vmem, size = 0x12000, scoped, tag = 'internal scratch']
  %s0 = inlined_call_operand.vmem [shape: bf16[8192,27], index: 0, kind: input, shape index: {}]
  %s1 = inlined_call_operand.vmem [shape: bf16[27,32], index: 1, kind: input, shape index: {}]
  %s2 = inlined_call_operand.vmem [shape: f32[1,32], index: 2, kind: input, shape index: {}]
  %s3 = inlined_call_operand.vmem [shape: bf16[8192,32], index: 3, kind: output, shape index: {}]
  %s4 = sld [smem:[#allocation0]]
  $region45: #{matmul_bias_act.1} parent=0
    _
  %s6 = ssub.s32 1, %s4
  %s7 = scalar_select 0, %s6, %s4
  loop: start=0, step=1, limit=18
  $region2: #{matmul_bias_act.1} parent=0 // loop_pre_header
    _
  $region3: #{matmul_bias_act.1} parent=0 // loop_header
    %s9 = sphi 0, %s13
    %p10 = scmp.ge.s32.totalorder %s9, 18
    %s16 = sphi 0, %s28
    %s17 = sphi 0, %s24
    %s18 = sphi 0, %s16
    %s19 = sphi 0, %s17
    %s20 = sphi 0, %s18
    %s21 = sphi 0, %s19
    %s31 = sphi 0, %s33
    %s34 = sphi 0, %s31
    %s35 = sphi 0, %s34
    %s51 = sphi 0, %s35
    %s57 = sphi 0, %s59
    %s60 = sphi 0, %s57
    %s61 = sphi 0, %s60
    %s77 = sphi 0, %s61
    %s83 = sphi 0, %s85
    %s86 = sphi 0, %s83
    %s87 = sphi 0, %s86
    %s103 = sphi 0, %s87
    %s111 = sphi 0, %s113
    %s114 = sphi 0, %s111
    %s115 = sphi 0, %s114
    %s131 = sphi 0, %s115
  $region4: #{matmul_bias_act.1} parent=0 // loop_header_branch
    %12 = sbr.rel (%p10) target = $region8
  $region5: #{matmul_bias_act.1} parent=0 // loop_body
    %s14 = ssub.s32 %s9, 1
    %s15 = ssub.s32 %s9, 2
    %s22 = sadd.s32 1, %s17
    %p23 = scmp.ge.s32.totalorder %s22, 1
    %s24 = scalar_select %p23, 0, %s22
    %s25 = sadd.s32 1, %s16
    %s26 = scalar_select %p23, %s25, %s16
    %p27 = scmp.ge.s32.totalorder %s26, 16
    %s28 = scalar_select %p27, 0, %s26
    %s29 = ssub.s32 %s16, %s28
    %p30 = scmp.eq.s32.totalorder %s29, 0
    %s32 = sadd.s32 %s31, 1
    %s33 = scalar_select %p30, %s31, %s32
    %p36 = pneg %p30
    %p37 = scmp.eq.s32.totalorder %s9, 15
    %p38 = por %p36, %p37
    %p39 = scmp.ne.s32.totalorder %s31, %s34
    %p40 = scmp.eq.s32.totalorder %s9, 0
    %p41 = por %p39, %p40
    %p42 = scmp.ne.s32.totalorder %s31, %s34
    %p43 = scmp.eq.s32.totalorder %s14, 15
    %p44 = por %p42, %p43
    %p45 = scmp.ne.s32.totalorder %s34, %s35
    %p46 = scmp.eq.s32.totalorder %s14, 0
    %p47 = por %p45, %p46
    %p48 = scmp.ne.s32.totalorder %s34, %s35
    %p49 = scmp.eq.s32.totalorder %s15, 15
    %p50 = por %p48, %p49
    %p52 = scmp.ne.s32.totalorder %s35, %s51
    %p53 = scmp.eq.s32.totalorder %s15, 0
    %p54 = por %p52, %p53
    %s55 = ssub.s32 %s17, %s24
    %p56 = scmp.eq.s32.totalorder %s55, 0
    %s58 = sadd.s32 %s57, 1
    %s59 = scalar_select %p56, %s57, %s58
    %p62 = pneg %p56
    %p63 = scmp.eq.s32.totalorder %s9, 15
    %p64 = por %p62, %p63
    %p65 = scmp.ne.s32.totalorder %s57, %s60
    %p66 = scmp.eq.s32.totalorder %s9, 0
    %p67 = por %p65, %p66
    %p68 = scmp.ne.s32.totalorder %s57, %s60
    %p69 = scmp.eq.s32.totalorder %s14, 15
    %p70 = por %p68, %p69
    %p71 = scmp.ne.s32.totalorder %s60, %s61
    %p72 = scmp.eq.s32.totalorder %s14, 0
    %p73 = por %p71, %p72
    %p74 = scmp.ne.s32.totalorder %s60, %s61
    %p75 = scmp.eq.s32.totalorder %s15, 15
    %p76 = por %p74, %p75
    %p78 = scmp.ne.s32.totalorder %s61, %s77
    %p79 = scmp.eq.s32.totalorder %s15, 0
    %p80 = por %p78, %p79
    %s81 = ssub.s32 %s17, %s24
    %p82 = scmp.eq.s32.totalorder %s81, 0
    %s84 = sadd.s32 %s83, 1
    %s85 = scalar_select %p82, %s83, %s84
    %p88 = pneg %p82
    %p89 = scmp.eq.s32.totalorder %s9, 15
    %p90 = por %p88, %p89
    %p91 = scmp.ne.s32.totalorder %s83, %s86
    %p92 = scmp.eq.s32.totalorder %s9, 0
    %p93 = por %p91, %p92
    %p94 = scmp.ne.s32.totalorder %s83, %s86
    %p95 = scmp.eq.s32.totalorder %s14, 15
    %p96 = por %p94, %p95
    %p97 = scmp.ne.s32.totalorder %s86, %s87
    %p98 = scmp.eq.s32.totalorder %s14, 0
    %p99 = por %p97, %p98
    %p100 = scmp.ne.s32.totalorder %s86, %s87
    %p101 = scmp.eq.s32.totalorder %s15, 15
    %p102 = por %p100, %p101
    %p104 = scmp.ne.s32.totalorder %s87, %s103
    %p105 = scmp.eq.s32.totalorder %s15, 0
    %p106 = por %p104, %p105
    %s107 = ssub.s32 %s16, %s28
    %s108 = ssub.s32 %s17, %s24
    %s109 = sor.u32 %s107, %s108
    %p110 = scmp.eq.s32.totalorder %s109, 0
    %s112 = sadd.s32 %s111, 1
    %s113 = scalar_select %p110, %s111, %s112
    %p116 = pneg %p110
    %p117 = scmp.eq.s32.totalorder %s9, 15
    %p118 = por %p116, %p117
    %p119 = scmp.ne.s32.totalorder %s111, %s114
    %p120 = scmp.eq.s32.totalorder %s9, 0
    %p121 = por %p119, %p120
    %p122 = scmp.ne.s32.totalorder %s111, %s114
    %p123 = scmp.eq.s32.totalorder %s14, 15
    %p124 = por %p122, %p123
    %p125 = scmp.ne.s32.totalorder %s114, %s115
    %p126 = scmp.eq.s32.totalorder %s14, 0
    %p127 = por %p125, %p126
    %p128 = scmp.ne.s32.totalorder %s114, %s115
    %p129 = scmp.eq.s32.totalorder %s15, 15
    %p130 = por %p128, %p129
    %p132 = scmp.ne.s32.totalorder %s115, %s131
    %p133 = scmp.eq.s32.totalorder %s15, 0
    %p134 = por %p132, %p133
    %p135 = scmp.le.s32.totalorder 1, %s9
    %p136 = scmp.lt.s32.totalorder %s9, 17
    %p137 = pnand %p135, %p136
    %p138 = pneg %p137
    // Predicated region
    $region9: #{matmul_bias_act.1} parent=5 // pred_check
      _
    $region10: #{matmul_bias_act.1} parent=5 // pred_check_branch
      %140 = sbr.rel (%p137) target = $region12
    $region11: #{matmul_bias_act.1} parent=5 // pred_region
      %s141 = ssub.s32 %s9, 1
      // Predicated region
      $region13: #{matmul_bias_act.1} parent=11 // pred_check
        %p142 = pneg %p73
      $region14: #{matmul_bias_act.1} parent=11 // pred_check_branch
        %144 = sbr.rel (%p142) target = $region16
      $region15: #{matmul_bias_act.1} parent=11 // pred_region
        %p145 = scmp.lt.s32.totalorder %s19, 0
        %s146 = scalar_select %p145, %s19, 0
        %s147 = smul.addr %s146, 4
        %s148 = scalar_lea.vmem %s1, %s147
      $region16: #{matmul_bias_act.1} parent=11 // pred_fallthru
        _
      // Predicated region
      $region17: #{matmul_bias_act.1} parent=11 // pred_check
        %p149 = pneg %p99
      $region18: #{matmul_bias_act.1} parent=11 // pred_check_branch
        %151 = sbr.rel (%p149) target = $region20
      $region19: #{matmul_bias_act.1} parent=11 // pred_region
        %p152 = scmp.lt.s32.totalorder %s19, 0
        %s153 = scalar_select %p152, %s19, 0
        %s154 = scalar_lea.vmem %s2, %s153
      $region20: #{matmul_bias_act.1} parent=11 // pred_fallthru
        _
    $region12: #{matmul_bias_act.1} parent=5 // pred_fallthru
      _
    %p155 = scmp.lt.s32.totalorder %s9, 16
    // Predicated region
    $region21: #{matmul_bias_act.1} parent=5 // pred_check
      %p156 = pneg %p155
    $region22: #{matmul_bias_act.1} parent=5 // pred_check_branch
      %158 = sbr.rel (%p156) target = $region24
    $region23: #{matmul_bias_act.1} parent=5 // pred_region
      // Predicated region
      $region25: #{matmul_bias_act.1} parent=23 // pred_check
        %p159 = pneg %p41
      $region26: #{matmul_bias_act.1} parent=23 // pred_check_branch
        %161 = sbr.rel (%p159) target = $region28
      $region27: #{matmul_bias_act.1} parent=23 // pred_region
        %s162 = smul.u32 64, %s16
        %p163 = scmp.lt.s32.totalorder %s162, 1023
        %s164 = scalar_select %p163, %s162, 1023
        %s165 = smul.addr %s164, 4
        %s166 = scalar_lea.vmem %s0, %s165
        %s167 = smul.u32 64, %s16
      $region28: #{matmul_bias_act.1} parent=23 // pred_fallthru
        _
    $region24: #{matmul_bias_act.1} parent=5 // pred_fallthru
      _
    %p168 = scmp.le.s32.totalorder 1, %s9
    %p169 = scmp.lt.s32.totalorder %s9, 17
    %p170 = pnand %p168, %p169
    %p171 = pneg %p170
    // Predicated region
    $region29: #{matmul_bias_act.1} parent=5 // pred_check
      _
    $region30: #{matmul_bias_act.1} parent=5 // pred_check_branch
      %173 = sbr.rel (%p170) target = $region32
    $region31: #{matmul_bias_act.1} parent=5 // pred_region
      %s174 = ssub.s32 %s9, 1
      %s175 = smul.u32 64, %s18
      %p176 = scmp.lt.s32.totalorder %s175, 1023
      %s177 = scalar_select %p176, %s175, 1023
      %s178 = smul.addr %s177, 4
      %s179 = scalar_lea.vmem %s0, %s178
      %p180 = pneg %p47
      %p181 = pneg %p44
      %p182 = scmp.lt.s32.totalorder %s19, 0
      %s183 = scalar_select %p182, %s19, 0
      %s184 = smul.addr %s183, 4
      %s185 = scalar_lea.vmem %s1, %s184
      %p186 = pneg %p73
      %p187 = pneg %p70
      %p188 = scmp.lt.s32.totalorder %s19, 0
      %s189 = scalar_select %p188, %s19, 0
      %s190 = scalar_lea.vmem %s2, %s189
      %p191 = pneg %p99
      %p192 = pneg %p96
      %p193 = pneg %p127
      %p194 = pneg %p124
      %s195 = smul.u32 64, %s18
      %p196 = scmp.lt.s32.totalorder %s195, 1023
      %s197 = scalar_select %p196, %s195, 1023
      %p198 = scmp.lt.s32.totalorder %s19, 0
      %s199 = scalar_select %p198, %s19, 0
      %s200 = sadd.s32 %s199, %s197
      %s201 = smul.addr %s200, 4
      %s202 = scalar_lea.vmem %s3, %s201
      %s203 = smul.u32 64, %s18
      %p204 = scmp.lt.s32.totalorder %s203, 1023
      %s205 = scalar_select %p204, %s203, 1023
      %s206 = smul.addr %s205, 4
      %s207 = scalar_lea.vmem %s0, %s206
      %s208 = smul.u32 64, %s18
      %p209 = scmp.lt.s32.totalorder %s19, 0
      %s210 = scalar_select %p209, %s19, 0
      %s211 = smul.addr %s210, 4
      %s212 = scalar_lea.vmem %s1, %s211
      %p213 = scmp.lt.s32.totalorder %s19, 0
      %s214 = scalar_select %p213, %s19, 0
      %s215 = scalar_lea.vmem %s2, %s214
      %s216 = smul.u32 64, %s18
      %p217 = scmp.lt.s32.totalorder %s216, 1023
      %s218 = scalar_select %p217, %s216, 1023
      %p219 = scmp.lt.s32.totalorder %s19, 0
      %s220 = scalar_select %p219, %s19, 0
      %s221 = sadd.s32 %s220, %s218
      %s222 = smul.addr %s221, 4
      %s223 = scalar_lea.vmem %s3, %s222
      %s224 = smul.u32 64, %s18
      %v226 = vld [vmem:[%s207] sm:$0xf]
      %v227 = vld [vmem:[%s207 + $0x4] sm:$0xf]
      %v228 = vld [vmem:[%s207 + $0x8] sm:$0xf]
      %v229 = vld [vmem:[%s207 + $0xc] sm:$0xf]
      %v230 = vld [vmem:[%s207 + $0x10] sm:$0xf]
      %v231 = vld [vmem:[%s207 + $0x14] sm:$0xf]
      %v232 = vld [vmem:[%s207 + $0x18] sm:$0xf]
      %v233 = vld [vmem:[%s207 + $0x1c] sm:$0xf]
      %v234 = vld [vmem:[%s207 + $0x20] sm:$0xf]
      %v235 = vld [vmem:[%s207 + $0x24] sm:$0xf]
      %v236 = vld [vmem:[%s207 + $0x28] sm:$0xf]
      %v237 = vld [vmem:[%s207 + $0x2c] sm:$0xf]
      %v238 = vld [vmem:[%s207 + $0x30] sm:$0xf]
      %v239 = vld [vmem:[%s207 + $0x34] sm:$0xf]
      %v240 = vld [vmem:[%s207 + $0x38] sm:$0xf]
      %v241 = vld [vmem:[%s207 + $0x3c] sm:$0xf]
      %v242 = vld [vmem:[%s207 + $0x40] sm:$0xf]
      %v243 = vld [vmem:[%s207 + $0x44] sm:$0xf]
      %v244 = vld [vmem:[%s207 + $0x48] sm:$0xf]
      %v245 = vld [vmem:[%s207 + $0x4c] sm:$0xf]
      %v246 = vld [vmem:[%s207 + $0x50] sm:$0xf]
      %v247 = vld [vmem:[%s207 + $0x54] sm:$0xf]
      %v248 = vld [vmem:[%s207 + $0x58] sm:$0xf]
      %v249 = vld [vmem:[%s207 + $0x5c] sm:$0xf]
      %v250 = vld [vmem:[%s207 + $0x60] sm:$0xf]
      %v251 = vld [vmem:[%s207 + $0x64] sm:$0xf]
      %v252 = vld [vmem:[%s207 + $0x68] sm:$0xf]
      %v253 = vld [vmem:[%s207 + $0x6c] sm:$0xf]
      %v254 = vld [vmem:[%s207 + $0x70] sm:$0xf]
      %v255 = vld [vmem:[%s207 + $0x74] sm:$0xf]
      %v256 = vld [vmem:[%s207 + $0x78] sm:$0xf]
      %v257 = vld [vmem:[%s207 + $0x7c] sm:$0xf]
      %v258 = vld [vmem:[%s207 + $0x80] sm:$0xf]
      %v259 = vld [vmem:[%s207 + $0x84] sm:$0xf]
      %v260 = vld [vmem:[%s207 + $0x88] sm:$0xf]
      %v261 = vld [vmem:[%s207 + $0x8c] sm:$0xf]
      %v262 = vld [vmem:[%s207 + $0x90] sm:$0xf]
      %v263 = vld [vmem:[%s207 + $0x94] sm:$0xf]
      %v264 = vld [vmem:[%s207 + $0x98] sm:$0xf]
      %v265 = vld [vmem:[%s207 + $0x9c] sm:$0xf]
      %v266 = vld [vmem:[%s207 + $0xa0] sm:$0xf]
      %v267 = vld [vmem:[%s207 + $0xa4] sm:$0xf]
      %v268 = vld [vmem:[%s207 + $0xa8] sm:$0xf]
      %v269 = vld [vmem:[%s207 + $0xac] sm:$0xf]
      %v270 = vld [vmem:[%s207 + $0xb0] sm:$0xf]
      %v271 = vld [vmem:[%s207 + $0xb4] sm:$0xf]
      %v272 = vld [vmem:[%s207 + $0xb8] sm:$0xf]
      %v273 = vld [vmem:[%s207 + $0xbc] sm:$0xf]
      %v274 = vld [vmem:[%s207 + $0xc0] sm:$0xf]
      %v275 = vld [vmem:[%s207 + $0xc4] sm:$0xf]
      %v276 = vld [vmem:[%s207 + $0xc8] sm:$0xf]
      %v277 = vld [vmem:[%s207 + $0xcc] sm:$0xf]
      %v278 = vld [vmem:[%s207 + $0xd0] sm:$0xf]
      %v279 = vld [vmem:[%s207 + $0xd4] sm:$0xf]
      %v280 = vld [vmem:[%s207 + $0xd8] sm:$0xf]
      %v281 = vld [vmem:[%s207 + $0xdc] sm:$0xf]
      %v282 = vld [vmem:[%s207 + $0xe0] sm:$0xf]
      %v283 = vld [vmem:[%s207 + $0xe4] sm:$0xf]
      %v284 = vld [vmem:[%s207 + $0xe8] sm:$0xf]
      %v285 = vld [vmem:[%s207 + $0xec] sm:$0xf]
      %v286 = vld [vmem:[%s207 + $0xf0] sm:$0xf]
      %v287 = vld [vmem:[%s207 + $0xf4] sm:$0xf]
      %v288 = vld [vmem:[%s207 + $0xf8] sm:$0xf]
      %v289 = vld [vmem:[%s207 + $0xfc] sm:$0xf]
      %v290 = vld [vmem:[%s212] sm:$0xf]
      %v291 = vld [vmem:[%s212 + $0x4] sm:$0xf]
      %v292 = vld [vmem:[%s212 + $0x8] sm:$0xf]
      %v293 = vld [vmem:[%s212 + $0xc] sm:$0x3]
      %v294 = vld [vmem:[%s215] sm:$0x1]
      %v296 = vlaneseq
      %v297 = vshrl.u32 %v296, 7
      %v298 = vsub.s32 0, %v297
      %v299 = vrot.slane %v294, %v298
      %v365 = vunpack.c.l.b16 %v226
      %v366 = vunpack.c.l.b16 %v227
      %v367 = vunpack.c.l.b16 %v228
      %v368 = vunpack.c.l.b16 %v229
      %v369 = vunpack.c.l.b16 %v230
      %v370 = vunpack.c.l.b16 %v231
      %v371 = vunpack.c.l.b16 %v232
      %v372 = vunpack.c.l.b16 %v233
      %v373 = vunpack.c.l.b16 %v234
      %v374 = vunpack.c.l.b16 %v235
      %v375 = vunpack.c.l.b16 %v236
      %v376 = vunpack.c.l.b16 %v237
      %v377 = vunpack.c.l.b16 %v238
      %v378 = vunpack.c.l.b16 %v239
      %v379 = vunpack.c.l.b16 %v240
      %v380 = vunpack.c.l.b16 %v241
      %v381 = vunpack.c.l.b16 %v242
      %v382 = vunpack.c.l.b16 %v243
      %v383 = vunpack.c.l.b16 %v244
      %v384 = vunpack.c.l.b16 %v245
      %v385 = vunpack.c.l.b16 %v246
      %v386 = vunpack.c.l.b16 %v247
      %v387 = vunpack.c.l.b16 %v248
      %v388 = vunpack.c.l.b16 %v249
      %v389 = vunpack.c.l.b16 %v250
      %v390 = vunpack.c.l.b16 %v251
      %v391 = vunpack.c.l.b16 %v252
      %v392 = vunpack.c.l.b16 %v253
      %v393 = vunpack.c.l.b16 %v254
      %v394 = vunpack.c.l.b16 %v255
      %v395 = vunpack.c.l.b16 %v256
      %v396 = vunpack.c.l.b16 %v257
      %v397 = vunpack.c.l.b16 %v258
      %v398 = vunpack.c.l.b16 %v259
      %v399 = vunpack.c.l.b16 %v260
      %v400 = vunpack.c.l.b16 %v261
      %v401 = vunpack.c.l.b16 %v262
      %v402 = vunpack.c.l.b16 %v263
      %v403 = vunpack.c.l.b16 %v264
      %v404 = vunpack.c.l.b16 %v265
      %v405 = vunpack.c.l.b16 %v266
      %v406 = vunpack.c.l.b16 %v267
      %v407 = vunpack.c.l.b16 %v268
      %v408 = vunpack.c.l.b16 %v269
      %v409 = vunpack.c.l.b16 %v270
      %v410 = vunpack.c.l.b16 %v271
      %v411 = vunpack.c.l.b16 %v272
      %v412 = vunpack.c.l.b16 %v273
      %v413 = vunpack.c.l.b16 %v274
      %v414 = vunpack.c.l.b16 %v275
      %v415 = vunpack.c.l.b16 %v276
      %v416 = vunpack.c.l.b16 %v277
      %v417 = vunpack.c.l.b16 %v278
      %v418 = vunpack.c.l.b16 %v279
      %v419 = vunpack.c.l.b16 %v280
      %v420 = vunpack.c.l.b16 %v281
      %v421 = vunpack.c.l.b16 %v282
      %v422 = vunpack.c.l.b16 %v283
      %v423 = vunpack.c.l.b16 %v284
      %v424 = vunpack.c.l.b16 %v285
      %v425 = vunpack.c.l.b16 %v286
      %v426 = vunpack.c.l.b16 %v287
      %v427 = vunpack.c.l.b16 %v288
      %v428 = vunpack.c.l.b16 %v289
      %v429 = vpack.c.b16 %v366, %v365
      %v430 = vpack.c.b16 %v368, %v367
      %v431 = vpack.c.b16 %v370, %v369
      %v432 = vpack.c.b16 %v372, %v371
      %v433 = vpack.c.b16 %v374, %v373
      %v434 = vpack.c.b16 %v376, %v375
      %v435 = vpack.c.b16 %v378, %v377
      %v436 = vpack.c.b16 %v380, %v379
      %v437 = vpack.c.b16 %v382, %v381
      %v438 = vpack.c.b16 %v384, %v383
      %v439 = vpack.c.b16 %v386, %v385
      %v440 = vpack.c.b16 %v388, %v387
      %v441 = vpack.c.b16 %v390, %v389
      %v442 = vpack.c.b16 %v392, %v391
      %v443 = vpack.c.b16 %v394, %v393
      %v444 = vpack.c.b16 %v396, %v395
      %v445 = vpack.c.b16 %v398, %v397
      %v446 = vpack.c.b16 %v400, %v399
      %v447 = vpack.c.b16 %v402, %v401
      %v448 = vpack.c.b16 %v404, %v403
      %v449 = vpack.c.b16 %v406, %v405
      %v450 = vpack.c.b16 %v408, %v407
      %v451 = vpack.c.b16 %v410, %v409
      %v452 = vpack.c.b16 %v412, %v411
      %v453 = vpack.c.b16 %v414, %v413
      %v454 = vpack.c.b16 %v416, %v415
      %v455 = vpack.c.b16 %v418, %v417
      %v456 = vpack.c.b16 %v420, %v419
      %v457 = vpack.c.b16 %v422, %v421
      %v458 = vpack.c.b16 %v424, %v423
      %v459 = vpack.c.b16 %v426, %v425
      %v460 = vpack.c.b16 %v428, %v427
      %v465 = vunpack.c.l.b16 %v290
      %v466 = vunpack.c.l.b16 %v291
      %v467 = vunpack.c.l.b16 %v292
      %v468 = vunpack.c.l.b16 %v293
      %v469 = vpack.c.b16 %v466, %v465
      %v470 = vpack.c.b16 %v468, %v467
      %vm472 = vcmask 220160
      %v474 = vsel %vm472, %v429, 0
      %v477 = vsel %vm472, %v430, 0
      %v480 = vsel %vm472, %v431, 0
      %v483 = vsel %vm472, %v432, 0
      %v486 = vsel %vm472, %v433, 0
      %v489 = vsel %vm472, %v434, 0
      %v492 = vsel %vm472, %v435, 0
      %v495 = vsel %vm472, %v436, 0
      %v498 = vsel %vm472, %v437, 0
      %v501 = vsel %vm472, %v438, 0
      %v504 = vsel %vm472, %v439, 0
      %v507 = vsel %vm472, %v440, 0
      %v510 = vsel %vm472, %v441, 0
      %v513 = vsel %vm472, %v442, 0
      %v516 = vsel %vm472, %v443, 0
      %v519 = vsel %vm472, %v444, 0
      %v522 = vsel %vm472, %v445, 0
      %v525 = vsel %vm472, %v446, 0
      %v528 = vsel %vm472, %v447, 0
      %v531 = vsel %vm472, %v448, 0
      %v534 = vsel %vm472, %v449, 0
      %v537 = vsel %vm472, %v450, 0
      %v540 = vsel %vm472, %v451, 0
      %v543 = vsel %vm472, %v452, 0
      %v546 = vsel %vm472, %v453, 0
      %v549 = vsel %vm472, %v454, 0
      %v552 = vsel %vm472, %v455, 0
      %v555 = vsel %vm472, %v456, 0
      %v558 = vsel %vm472, %v457, 0
      %v561 = vsel %vm472, %v458, 0
      %v564 = vsel %vm472, %v459, 0
      %v567 = vsel %vm472, %v460, 0
      %vm569 = vcmask 1044480
      %vm570 = vcmask 1045504
      %v571 = vsel %vm569, 4294967295, 65535
      %v572 = vsel %vm570, %v571, 0
      %v574 = vand.u32 %v470, %v572
      %576 = vmatprep.subr.bf16.mxu0 0
      %577 = vmatpush1.bf16.msra.mxu0 %v469
      %578 = vmatprep.subr.bf16.mxu0 0
      %579 = vmatpush1.bf16.msra.mxu0 %v574
      %580 = vmatprep.subr.bf16.mxu0 0
      %581 = vmatpush1.bf16.msra.mxu0 0
      %582 = vmatprep.subr.bf16.mxu0 0
      %583 = vmatpush1.bf16.msra.mxu0 0
      %584 = vmatprep.subr.bf16.mxu0 0
      %585 = vmatpush1.bf16.msra.mxu0 0
      %586 = vmatprep.subr.bf16.mxu0 0
      %587 = vmatpush1.bf16.msra.mxu0 0
      %588 = vmatprep.subr.bf16.mxu0 0
      %589 = vmatpush1.bf16.msra.mxu0 0
      %590 = vmatprep.subr.bf16.mxu0 0
      %591 = vmatpush1.bf16.msra.mxu0 0
      %592 = vmatprep.subr.bf16.mxu0 0
      %593 = vmatpush1.bf16.msra.mxu0 0
      %594 = vmatprep.subr.bf16.mxu0 0
      %595 = vmatpush1.bf16.msra.mxu0 0
      %596 = vmatprep.subr.bf16.mxu0 0
      %597 = vmatpush1.bf16.msra.mxu0 0
      %598 = vmatprep.subr.bf16.mxu0 0
      %599 = vmatpush1.bf16.msra.mxu0 0
      %600 = vmatprep.subr.bf16.mxu0 0
      %601 = vmatpush1.bf16.msra.mxu0 0
      %602 = vmatprep.subr.bf16.mxu0 0
      %603 = vmatpush1.bf16.msra.mxu0 0
      %604 = vmatprep.subr.bf16.mxu0 0
      %605 = vmatpush1.bf16.msra.mxu0 0
      %606 = vmatprep.subr.bf16.mxu0 0
      %607 = vmatpush1.bf16.msra.mxu0 0
      %608 = vmatprep.mubr.bf16.mxu0 0
      %609 = vmatmul.mubr.bf16.gmra.mrb[0].mxu0 %v474
      %v610 = vpop.f32.mrb[0].mxu0
      %v611 = vadd.f32 %v299, %v610
      %v612 = vpop.f32.mrb[0].mxu0
      %v613 = vpop.f32.mrb[0].mxu0
      %v614 = vadd.f32 %v299, %v613
      %v615 = vpop.f32.mrb[0].mxu0
      %616 = vmatprep.mubr.bf16.mxu0 0
      %617 = vmatmul.mubr.bf16.gmra.mrb[0].mxu0 %v477
      %v618 = vpop.f32.mrb[0].mxu0
      %v619 = vadd.f32 %v299, %v618
      %v620 = vpop.f32.mrb[0].mxu0
      %v621 = vpop.f32.mrb[0].mxu0
      %v622 = vadd.f32 %v299, %v621
      %v623 = vpop.f32.mrb[0].mxu0
      %624 = vmatprep.mubr.bf16.mxu0 0
      %625 = vmatmul.mubr.bf16.gmra.mrb[0].mxu0 %v480
      %v626 = vpop.f32.mrb[0].mxu0
      %v627 = vadd.f32 %v299, %v626
      %v628 = vpop.f32.mrb[0].mxu0
      %v629 = vpop.f32.mrb[0].mxu0
      %v630 = vadd.f32 %v299, %v629
      %v631 = vpop.f32.mrb[0].mxu0
      %632 = vmatprep.mubr.bf16.mxu0 0
      %633 = vmatmul.mubr.bf16.gmra.mrb[0].mxu0 %v483
      %v634 = vpop.f32.mrb[0].mxu0
      %v635 = vadd.f32 %v299, %v634
      %v636 = vpop.f32.mrb[0].mxu0
      %v637 = vpop.f32.mrb[0].mxu0
      %v638 = vadd.f32 %v299, %v637
      %v639 = vpop.f32.mrb[0].mxu0
      %640 = vmatprep.mubr.bf16.mxu0 0
      %641 = vmatmul.mubr.bf16.gmra.mrb[0].mxu0 %v486
      %v642 = vpop.f32.mrb[0].mxu0
      %v643 = vadd.f32 %v299, %v642
      %v644 = vpop.f32.mrb[0].mxu0
      %v645 = vpop.f32.mrb[0].mxu0
      %v646 = vadd.f32 %v299, %v645
      %v647 = vpop.f32.mrb[0].mxu0
      %648 = vmatprep.mubr.bf16.mxu0 0
      %649 = vmatmul.mubr.bf16.gmra.mrb[0].mxu0 %v489
      %v650 = vpop.f32.mrb[0].mxu0
      %v651 = vadd.f32 %v299, %v650
      %v652 = vpop.f32.mrb[0].mxu0
      %v653 = vpop.f32.mrb[0].mxu0
      %v654 = vadd.f32 %v299, %v653
      %v655 = vpop.f32.mrb[0].mxu0
      %656 = vmatprep.mubr.bf16.mxu0 0
      %657 = vmatmul.mubr.bf16.gmra.mrb[0].mxu0 %v492
      %v658 = vpop.f32.mrb[0].mxu0
      %v659 = vadd.f32 %v299, %v658
      %v660 = vpop.f32.mrb[0].mxu0
      %v661 = vpop.f32.mrb[0].mxu0
      %v662 = vadd.f32 %v299, %v661
      %v663 = vpop.f32.mrb[0].mxu0
      %664 = vmatprep.mubr.bf16.mxu0 0
      %665 = vmatmul.mubr.bf16.gmra.mrb[0].mxu0 %v495
      %v666 = vpop.f32.mrb[0].mxu0
      %v667 = vadd.f32 %v299, %v666
      %v668 = vpop.f32.mrb[0].mxu0
      %v669 = vpop.f32.mrb[0].mxu0
      %v670 = vadd.f32 %v299, %v669
      %v671 = vpop.f32.mrb[0].mxu0
      %672 = vmatprep.mubr.bf16.mxu0 0
      %673 = vmatmul.mubr.bf16.gmra.mrb[0].mxu0 %v498
      %v674 = vpop.f32.mrb[0].mxu0
      %v675 = vadd.f32 %v299, %v674
      %v676 = vpop.f32.mrb[0].mxu0
      %v677 = vpop.f32.mrb[0].mxu0
      %v678 = vadd.f32 %v299, %v677
      %v679 = vpop.f32.mrb[0].mxu0
      %680 = vmatprep.mubr.bf16.mxu0 0
      %681 = vmatmul.mubr.bf16.gmra.mrb[0].mxu0 %v501
      %v682 = vpop.f32.mrb[0].mxu0
      %v683 = vadd.f32 %v299, %v682
      %v684 = vpop.f32.mrb[0].mxu0
      %v685 = vpop.f32.mrb[0].mxu0
      %v686 = vadd.f32 %v299, %v685
      %v687 = vpop.f32.mrb[0].mxu0
      %688 = vmatprep.mubr.bf16.mxu0 0
      %689 = vmatmul.mubr.bf16.gmra.mrb[0].mxu0 %v504
      %v690 = vpop.f32.mrb[0].mxu0
      %v691 = vadd.f32 %v299, %v690
      %v692 = vpop.f32.mrb[0].mxu0
      %v693 = vpop.f32.mrb[0].mxu0
      %v694 = vadd.f32 %v299, %v693
      %v695 = vpop.f32.mrb[0].mxu0
      %696 = vmatprep.mubr.bf16.mxu0 0
      %697 = vmatmul.mubr.bf16.gmra.mrb[0].mxu0 %v507
      %v698 = vpop.f32.mrb[0].mxu0
      %v699 = vadd.f32 %v299, %v698
      %v700 = vpop.f32.mrb[0].mxu0
      %v701 = vpop.f32.mrb[0].mxu0
      %v702 = vadd.f32 %v299, %v701
      %v703 = vpop.f32.mrb[0].mxu0
      %704 = vmatprep.mubr.bf16.mxu0 0
      %705 = vmatmul.mubr.bf16.gmra.mrb[0].mxu0 %v510
      %v706 = vpop.f32.mrb[0].mxu0
      %v707 = vadd.f32 %v299, %v706
      %v708 = vpop.f32.mrb[0].mxu0
      %v709 = vpop.f32.mrb[0].mxu0
      %v710 = vadd.f32 %v299, %v709
      %v711 = vpop.f32.mrb[0].mxu0
      %712 = vmatprep.mubr.bf16.mxu0 0
      %713 = vmatmul.mubr.bf16.gmra.mrb[0].mxu0 %v513
      %v714 = vpop.f32.mrb[0].mxu0
      %v715 = vadd.f32 %v299, %v714
      %v716 = vpop.f32.mrb[0].mxu0
      %v717 = vpop.f32.mrb[0].mxu0
      %v718 = vadd.f32 %v299, %v717
      %v719 = vpop.f32.mrb[0].mxu0
      %720 = vmatprep.mubr.bf16.mxu0 0
      %721 = vmatmul.mubr.bf16.gmra.mrb[0].mxu0 %v516
      %v722 = vpop.f32.mrb[0].mxu0
      %v723 = vadd.f32 %v299, %v722
      %v724 = vpop.f32.mrb[0].mxu0
      %v725 = vpop.f32.mrb[0].mxu0
      %v726 = vadd.f32 %v299, %v725
      %v727 = vpop.f32.mrb[0].mxu0
      %728 = vmatprep.mubr.bf16.mxu0 0
      %729 = vmatmul.mubr.bf16.gmra.mrb[0].mxu0 %v519
      %v730 = vpop.f32.mrb[0].mxu0
      %v731 = vadd.f32 %v299, %v730
      %v732 = vpop.f32.mrb[0].mxu0
      %v733 = vpop.f32.mrb[0].mxu0
      %v734 = vadd.f32 %v299, %v733
      %v735 = vpop.f32.mrb[0].mxu0
      %736 = vmatprep.mubr.bf16.mxu0 0
      %737 = vmatmul.mubr.bf16.gmra.mrb[0].mxu0 %v522
      %v738 = vpop.f32.mrb[0].mxu0
      %v739 = vadd.f32 %v299, %v738
      %v740 = vpop.f32.mrb[0].mxu0
      %v741 = vpop.f32.mrb[0].mxu0
      %v742 = vadd.f32 %v299, %v741
      %v743 = vpop.f32.mrb[0].mxu0
      %744 = vmatprep.mubr.bf16.mxu0 0
      %745 = vmatmul.mubr.bf16.gmra.mrb[0].mxu0 %v525
      %v746 = vpop.f32.mrb[0].mxu0
      %v747 = vadd.f32 %v299, %v746
      %v748 = vpop.f32.mrb[0].mxu0
      %v749 = vpop.f32.mrb[0].mxu0
      %v750 = vadd.f32 %v299, %v749
      %v751 = vpop.f32.mrb[0].mxu0
      %752 = vmatprep.mubr.bf16.mxu0 0
      %753 = vmatmul.mubr.bf16.gmra.mrb[0].mxu0 %v528
      %v754 = vpop.f32.mrb[0].mxu0
      %v755 = vadd.f32 %v299, %v754
      %v756 = vpop.f32.mrb[0].mxu0
      %v757 = vpop.f32.mrb[0].mxu0
      %v758 = vadd.f32 %v299, %v757
      %v759 = vpop.f32.mrb[0].mxu0
      %760 = vmatprep.mubr.bf16.mxu0 0
      %761 = vmatmul.mubr.bf16.gmra.mrb[0].mxu0 %v531
      %v762 = vpop.f32.mrb[0].mxu0
      %v763 = vadd.f32 %v299, %v762
      %v764 = vpop.f32.mrb[0].mxu0
      %v765 = vpop.f32.mrb[0].mxu0
      %v766 = vadd.f32 %v299, %v765
      %v767 = vpop.f32.mrb[0].mxu0
      %768 = vmatprep.mubr.bf16.mxu0 0
      %769 = vmatmul.mubr.bf16.gmra.mrb[0].mxu0 %v534
      %v770 = vpop.f32.mrb[0].mxu0
      %v771 = vadd.f32 %v299, %v770
      %v772 = vpop.f32.mrb[0].mxu0
      %v773 = vpop.f32.mrb[0].mxu0
      %v774 = vadd.f32 %v299, %v773
      %v775 = vpop.f32.mrb[0].mxu0
      %776 = vmatprep.mubr.bf16.mxu0 0
      %777 = vmatmul.mubr.bf16.gmra.mrb[0].mxu0 %v537
      %v778 = vpop.f32.mrb[0].mxu0
      %v779 = vadd.f32 %v299, %v778
      %v780 = vpop.f32.mrb[0].mxu0
      %v781 = vpop.f32.mrb[0].mxu0
      %v782 = vadd.f32 %v299, %v781
      %v783 = vpop.f32.mrb[0].mxu0
      %784 = vmatprep.mubr.bf16.mxu0 0
      %785 = vmatmul.mubr.bf16.gmra.mrb[0].mxu0 %v540
      %v786 = vpop.f32.mrb[0].mxu0
      %v787 = vadd.f32 %v299, %v786
      %v788 = vpop.f32.mrb[0].mxu0
      %v789 = vpop.f32.mrb[0].mxu0
      %v790 = vadd.f32 %v299, %v789
      %v791 = vpop.f32.mrb[0].mxu0
      %792 = vmatprep.mubr.bf16.mxu0 0
      %793 = vmatmul.mubr.bf16.gmra.mrb[0].mxu0 %v543
      %v794 = vpop.f32.mrb[0].mxu0
      %v795 = vadd.f32 %v299, %v794
      %v796 = vpop.f32.mrb[0].mxu0
      %v797 = vpop.f32.mrb[0].mxu0
      %v798 = vadd.f32 %v299, %v797
      %v799 = vpop.f32.mrb[0].mxu0
      %800 = vmatprep.mubr.bf16.mxu0 0
      %801 = vmatmul.mubr.bf16.gmra.mrb[0].mxu0 %v546
      %v802 = vpop.f32.mrb[0].mxu0
      %v803 = vadd.f32 %v299, %v802
      %v804 = vpop.f32.mrb[0].mxu0
      %v805 = vpop.f32.mrb[0].mxu0
      %v806 = vadd.f32 %v299, %v805
      %v807 = vpop.f32.mrb[0].mxu0
      %808 = vmatprep.mubr.bf16.mxu0 0
      %809 = vmatmul.mubr.bf16.gmra.mrb[0].mxu0 %v549
      %v810 = vpop.f32.mrb[0].mxu0
      %v811 = vadd.f32 %v299, %v810
      %v812 = vpop.f32.mrb[0].mxu0
      %v813 = vpop.f32.mrb[0].mxu0
      %v814 = vadd.f32 %v299, %v813
      %v815 = vpop.f32.mrb[0].mxu0
      %816 = vmatprep.mubr.bf16.mxu0 0
      %817 = vmatmul.mubr.bf16.gmra.mrb[0].mxu0 %v552
      %v818 = vpop.f32.mrb[0].mxu0
      %v819 = vadd.f32 %v299, %v818
      %v820 = vpop.f32.mrb[0].mxu0
      %v821 = vpop.f32.mrb[0].mxu0
      %v822 = vadd.f32 %v299, %v821
      %v823 = vpop.f32.mrb[0].mxu0
      %824 = vmatprep.mubr.bf16.mxu0 0
      %825 = vmatmul.mubr.bf16.gmra.mrb[0].mxu0 %v555
      %v826 = vpop.f32.mrb[0].mxu0
      %v827 = vadd.f32 %v299, %v826
      %v828 = vpop.f32.mrb[0].mxu0
      %v829 = vpop.f32.mrb[0].mxu0
      %v830 = vadd.f32 %v299, %v829
      %v831 = vpop.f32.mrb[0].mxu0
      %832 = vmatprep.mubr.bf16.mxu0 0
      %833 = vmatmul.mubr.bf16.gmra.mrb[0].mxu0 %v558
      %v834 = vpop.f32.mrb[0].mxu0
      %v835 = vadd.f32 %v299, %v834
      %v836 = vpop.f32.mrb[0].mxu0
      %v837 = vpop.f32.mrb[0].mxu0
      %v838 = vadd.f32 %v299, %v837
      %v839 = vpop.f32.mrb[0].mxu0
      %840 = vmatprep.mubr.bf16.mxu0 0
      %841 = vmatmul.mubr.bf16.gmra.mrb[0].mxu0 %v561
      %v842 = vpop.f32.mrb[0].mxu0
      %v843 = vadd.f32 %v299, %v842
      %v844 = vpop.f32.mrb[0].mxu0
      %v845 = vpop.f32.mrb[0].mxu0
      %v846 = vadd.f32 %v299, %v845
      %v847 = vpop.f32.mrb[0].mxu0
      %848 = vmatprep.mubr.bf16.mxu0 0
      %849 = vmatmul.mubr.bf16.gmra.mrb[0].mxu0 %v564
      %v850 = vpop.f32.mrb[0].mxu0
      %v851 = vadd.f32 %v299, %v850
      %v852 = vpop.f32.mrb[0].mxu0
      %v853 = vpop.f32.mrb[0].mxu0
      %v854 = vadd.f32 %v299, %v853
      %v855 = vpop.f32.mrb[0].mxu0
      %856 = vmatprep.mubr.bf16.mxu0 0
      %857 = vmatmul.mubr.bf16.gmra.mrb[0].mxu0 %v567
      %v858 = vpop.f32.mrb[0].mxu0
      %v859 = vadd.f32 %v299, %v858
      %v860 = vpop.f32.mrb[0].mxu0
      %v861 = vpop.f32.mrb[0].mxu0
      %v862 = vadd.f32 %v299, %v861
      %v863 = vpop.f32.mrb[0].mxu0
      %864 = vdwg.mxu0
      %v865 = vmin.f32 %v611, 20.0
      %v866 = vmin.f32 %v614, 20.0
      %v867 = vmin.f32 %v619, 20.0
      %v868 = vmin.f32 %v622, 20.0
      %v869 = vmin.f32 %v627, 20.0
      %v870 = vmin.f32 %v630, 20.0
      %v871 = vmin.f32 %v635, 20.0
      %v872 = vmin.f32 %v638, 20.0
      %v873 = vmin.f32 %v643, 20.0
      %v874 = vmin.f32 %v646, 20.0
      %v875 = vmin.f32 %v651, 20.0
      %v876 = vmin.f32 %v654, 20.0
      %v877 = vmin.f32 %v659, 20.0
      %v878 = vmin.f32 %v662, 20.0
      %v879 = vmin.f32 %v667, 20.0
      %v880 = vmin.f32 %v670, 20.0
      %v881 = vmin.f32 %v675, 20.0
      %v882 = vmin.f32 %v678, 20.0
      %v883 = vmin.f32 %v683, 20.0
      %v884 = vmin.f32 %v686, 20.0
      %v885 = vmin.f32 %v691, 20.0
      %v886 = vmin.f32 %v694, 20.0
      %v887 = vmin.f32 %v699, 20.0
      %v888 = vmin.f32 %v702, 20.0
      %v889 = vmin.f32 %v707, 20.0
      %v890 = vmin.f32 %v710, 20.0
      %v891 = vmin.f32 %v715, 20.0
      %v892 = vmin.f32 %v718, 20.0
      %v893 = vmin.f32 %v723, 20.0
      %v894 = vmin.f32 %v726, 20.0
      %v895 = vmin.f32 %v731, 20.0
      %v896 = vmin.f32 %v734, 20.0
      %v897 = vmin.f32 %v739, 20.0
      %v898 = vmin.f32 %v742, 20.0
      %v899 = vmin.f32 %v747, 20.0
      %v900 = vmin.f32 %v750, 20.0
      %v901 = vmin.f32 %v755, 20.0
      %v902 = vmin.f32 %v758, 20.0
      %v903 = vmin.f32 %v763, 20.0
      %v904 = vmin.f32 %v766, 20.0
      %v905 = vmin.f32 %v771, 20.0
      %v906 = vmin.f32 %v774, 20.0
      %v907 = vmin.f32 %v779, 20.0
      %v908 = vmin.f32 %v782, 20.0
      %v909 = vmin.f32 %v787, 20.0
      %v910 = vmin.f32 %v790, 20.0
      %v911 = vmin.f32 %v795, 20.0
      %v912 = vmin.f32 %v798, 20.0
      %v913 = vmin.f32 %v803, 20.0
      %v914 = vmin.f32 %v806, 20.0
      %v915 = vmin.f32 %v811, 20.0
      %v916 = vmin.f32 %v814, 20.0
      %v917 = vmin.f32 %v819, 20.0
      %v918 = vmin.f32 %v822, 20.0
      %v919 = vmin.f32 %v827, 20.0
      %v920 = vmin.f32 %v830, 20.0
      %v921 = vmin.f32 %v835, 20.0
      %v922 = vmin.f32 %v838, 20.0
      %v923 = vmin.f32 %v843, 20.0
      %v924 = vmin.f32 %v846, 20.0
      %v925 = vmin.f32 %v851, 20.0
      %v926 = vmin.f32 %v854, 20.0
      %v927 = vmin.f32 %v859, 20.0
      %v928 = vmin.f32 %v862, 20.0
      %v929 = vmul.f32 %v865, 1.442695
      %v930 = vpow.pop %v929
      %v931 = vmul.f32 %v866, 1.442695
      %v932 = vpow.pop %v931
      %v933 = vmul.f32 %v867, 1.442695
      %v934 = vpow.pop %v933
      %v935 = vmul.f32 %v868, 1.442695
      %v936 = vpow.pop %v935
      %v937 = vmul.f32 %v869, 1.442695
      %v938 = vpow.pop %v937
      %v939 = vmul.f32 %v870, 1.442695
      %v940 = vpow.pop %v939
      %v941 = vmul.f32 %v871, 1.442695
      %v942 = vpow.pop %v941
      %v943 = vmul.f32 %v872, 1.442695
      %v944 = vpow.pop %v943
      %v945 = vmul.f32 %v873, 1.442695
      %v946 = vpow.pop %v945
      %v947 = vmul.f32 %v874, 1.442695
      %v948 = vpow.pop %v947
      %v949 = vmul.f32 %v875, 1.442695
      %v950 = vpow.pop %v949
      %v951 = vmul.f32 %v876, 1.442695
      %v952 = vpow.pop %v951
      %v953 = vmul.f32 %v877, 1.442695
      %v954 = vpow.pop %v953
      %v955 = vmul.f32 %v878, 1.442695
      %v956 = vpow.pop %v955
      %v957 = vmul.f32 %v879, 1.442695
      %v958 = vpow.pop %v957
      %v959 = vmul.f32 %v880, 1.442695
      %v960 = vpow.pop %v959
      %v961 = vmul.f32 %v881, 1.442695
      %v962 = vpow.pop %v961
      %v963 = vmul.f32 %v882, 1.442695
      %v964 = vpow.pop %v963
      %v965 = vmul.f32 %v883, 1.442695
      %v966 = vpow.pop %v965
      %v967 = vmul.f32 %v884, 1.442695
      %v968 = vpow.pop %v967
      %v969 = vmul.f32 %v885, 1.442695
      %v970 = vpow.pop %v969
      %v971 = vmul.f32 %v886, 1.442695
      %v972 = vpow.pop %v971
      %v973 = vmul.f32 %v887, 1.442695
      %v974 = vpow.pop %v973
      %v975 = vmul.f32 %v888, 1.442695
      %v976 = vpow.pop %v975
      %v977 = vmul.f32 %v889, 1.442695
      %v978 = vpow.pop %v977
      %v979 = vmul.f32 %v890, 1.442695
      %v980 = vpow.pop %v979
      %v981 = vmul.f32 %v891, 1.442695
      %v982 = vpow.pop %v981
      %v983 = vmul.f32 %v892, 1.442695
      %v984 = vpow.pop %v983
      %v985 = vmul.f32 %v893, 1.442695
      %v986 = vpow.pop %v985
      %v987 = vmul.f32 %v894, 1.442695
      %v988 = vpow.pop %v987
      %v989 = vmul.f32 %v895, 1.442695
      %v990 = vpow.pop %v989
      %v991 = vmul.f32 %v896, 1.442695
      %v992 = vpow.pop %v991
      %v993 = vmul.f32 %v897, 1.442695
      %v994 = vpow.pop %v993
      %v995 = vmul.f32 %v898, 1.442695
      %v996 = vpow.pop %v995
      %v997 = vmul.f32 %v899, 1.442695
      %v998 = vpow.pop %v997
      %v999 = vmul.f32 %v900, 1.442695
      %v1000 = vpow.pop %v999
      %v1001 = vmul.f32 %v901, 1.442695
      %v1002 = vpow.pop %v1001
      %v1003 = vmul.f32 %v902, 1.442695
      %v1004 = vpow.pop %v1003
      %v1005 = vmul.f32 %v903, 1.442695
      %v1006 = vpow.pop %v1005
      %v1007 = vmul.f32 %v904, 1.442695
      %v1008 = vpow.pop %v1007
      %v1009 = vmul.f32 %v905, 1.442695
      %v1010 = vpow.pop %v1009
      %v1011 = vmul.f32 %v906, 1.442695
      %v1012 = vpow.pop %v1011
      %v1013 = vmul.f32 %v907, 1.442695
      %v1014 = vpow.pop %v1013
      %v1015 = vmul.f32 %v908, 1.442695
      %v1016 = vpow.pop %v1015
      %v1017 = vmul.f32 %v909, 1.442695
      %v1018 = vpow.pop %v1017
      %v1019 = vmul.f32 %v910, 1.442695
      %v1020 = vpow.pop %v1019
      %v1021 = vmul.f32 %v911, 1.442695
      %v1022 = vpow.pop %v1021
      %v1023 = vmul.f32 %v912, 1.442695
      %v1024 = vpow.pop %v1023
      %v1025 = vmul.f32 %v913, 1.442695
      %v1026 = vpow.pop %v1025
      %v1027 = vmul.f32 %v914, 1.442695
      %v1028 = vpow.pop %v1027
      %v1029 = vmul.f32 %v915, 1.442695
      %v1030 = vpow.pop %v1029
      %v1031 = vmul.f32 %v916, 1.442695
      %v1032 = vpow.pop %v1031
      %v1033 = vmul.f32 %v917, 1.442695
      %v1034 = vpow.pop %v1033
      %v1035 = vmul.f32 %v918, 1.442695
      %v1036 = vpow.pop %v1035
      %v1037 = vmul.f32 %v919, 1.442695
      %v1038 = vpow.pop %v1037
      %v1039 = vmul.f32 %v920, 1.442695
      %v1040 = vpow.pop %v1039
      %v1041 = vmul.f32 %v921, 1.442695
      %v1042 = vpow.pop %v1041
      %v1043 = vmul.f32 %v922, 1.442695
      %v1044 = vpow.pop %v1043
      %v1045 = vmul.f32 %v923, 1.442695
      %v1046 = vpow.pop %v1045
      %v1047 = vmul.f32 %v924, 1.442695
      %v1048 = vpow.pop %v1047
      %v1049 = vmul.f32 %v925, 1.442695
      %v1050 = vpow.pop %v1049
      %v1051 = vmul.f32 %v926, 1.442695
      %v1052 = vpow.pop %v1051
      %v1053 = vmul.f32 %v927, 1.442695
      %v1054 = vpow.pop %v1053
      %v1055 = vmul.f32 %v928, 1.442695
      %v1056 = vpow.pop %v1055
      %v1057 = vadd.f32 %v930, 2.0
      %v1058 = vadd.f32 %v932, 2.0
      %v1059 = vadd.f32 %v934, 2.0
      %v1060 = vadd.f32 %v936, 2.0
      %v1061 = vadd.f32 %v938, 2.0
      %v1062 = vadd.f32 %v940, 2.0
      %v1063 = vadd.f32 %v942, 2.0
      %v1064 = vadd.f32 %v944, 2.0
      %v1065 = vadd.f32 %v946, 2.0
      %v1066 = vadd.f32 %v948, 2.0
      %v1067 = vadd.f32 %v950, 2.0
      %v1068 = vadd.f32 %v952, 2.0
      %v1069 = vadd.f32 %v954, 2.0
      %v1070 = vadd.f32 %v956, 2.0
      %v1071 = vadd.f32 %v958, 2.0
      %v1072 = vadd.f32 %v960, 2.0
      %v1073 = vadd.f32 %v962, 2.0
      %v1074 = vadd.f32 %v964, 2.0
      %v1075 = vadd.f32 %v966, 2.0
      %v1076 = vadd.f32 %v968, 2.0
      %v1077 = vadd.f32 %v970, 2.0
      %v1078 = vadd.f32 %v972, 2.0
      %v1079 = vadd.f32 %v974, 2.0
      %v1080 = vadd.f32 %v976, 2.0
      %v1081 = vadd.f32 %v978, 2.0
      %v1082 = vadd.f32 %v980, 2.0
      %v1083 = vadd.f32 %v982, 2.0
      %v1084 = vadd.f32 %v984, 2.0
      %v1085 = vadd.f32 %v986, 2.0
      %v1086 = vadd.f32 %v988, 2.0
      %v1087 = vadd.f32 %v990, 2.0
      %v1088 = vadd.f32 %v992, 2.0
      %v1089 = vadd.f32 %v994, 2.0
      %v1090 = vadd.f32 %v996, 2.0
      %v1091 = vadd.f32 %v998, 2.0
      %v1092 = vadd.f32 %v1000, 2.0
      %v1093 = vadd.f32 %v1002, 2.0
      %v1094 = vadd.f32 %v1004, 2.0
      %v1095 = vadd.f32 %v1006, 2.0
      %v1096 = vadd.f32 %v1008, 2.0
      %v1097 = vadd.f32 %v1010, 2.0
      %v1098 = vadd.f32 %v1012, 2.0
      %v1099 = vadd.f32 %v1014, 2.0
      %v1100 = vadd.f32 %v1016, 2.0
      %v1101 = vadd.f32 %v1018, 2.0
      %v1102 = vadd.f32 %v1020, 2.0
      %v1103 = vadd.f32 %v1022, 2.0
      %v1104 = vadd.f32 %v1024, 2.0
      %v1105 = vadd.f32 %v1026, 2.0
      %v1106 = vadd.f32 %v1028, 2.0
      %v1107 = vadd.f32 %v1030, 2.0
      %v1108 = vadd.f32 %v1032, 2.0
      %v1109 = vadd.f32 %v1034, 2.0
      %v1110 = vadd.f32 %v1036, 2.0
      %v1111 = vadd.f32 %v1038, 2.0
      %v1112 = vadd.f32 %v1040, 2.0
      %v1113 = vadd.f32 %v1042, 2.0
      %v1114 = vadd.f32 %v1044, 2.0
      %v1115 = vadd.f32 %v1046, 2.0
      %v1116 = vadd.f32 %v1048, 2.0
      %v1117 = vadd.f32 %v1050, 2.0
      %v1118 = vadd.f32 %v1052, 2.0
      %v1119 = vadd.f32 %v1054, 2.0
      %v1120 = vadd.f32 %v1056, 2.0
      %v1121 = vmul.f32 %v930, %v1057
      %v1122 = vmul.f32 %v932, %v1058
      %v1123 = vmul.f32 %v934, %v1059
      %v1124 = vmul.f32 %v936, %v1060
      %v1125 = vmul.f32 %v938, %v1061
      %v1126 = vmul.f32 %v940, %v1062
      %v1127 = vmul.f32 %v942, %v1063
      %v1128 = vmul.f32 %v944, %v1064
      %v1129 = vmul.f32 %v946, %v1065
      %v1130 = vmul.f32 %v948, %v1066
      %v1131 = vmul.f32 %v950, %v1067
      %v1132 = vmul.f32 %v952, %v1068
      %v1133 = vmul.f32 %v954, %v1069
      %v1134 = vmul.f32 %v956, %v1070
      %v1135 = vmul.f32 %v958, %v1071
      %v1136 = vmul.f32 %v960, %v1072
      %v1137 = vmul.f32 %v962, %v1073
      %v1138 = vmul.f32 %v964, %v1074
      %v1139 = vmul.f32 %v966, %v1075
      %v1140 = vmul.f32 %v968, %v1076
      %v1141 = vmul.f32 %v970, %v1077
      %v1142 = vmul.f32 %v972, %v1078
      %v1143 = vmul.f32 %v974, %v1079
      %v1144 = vmul.f32 %v976, %v1080
      %v1145 = vmul.f32 %v978, %v1081
      %v1146 = vmul.f32 %v980, %v1082
      %v1147 = vmul.f32 %v982, %v1083
      %v1148 = vmul.f32 %v984, %v1084
      %v1149 = vmul.f32 %v986, %v1085
      %v1150 = vmul.f32 %v988, %v1086
      %v1151 = vmul.f32 %v990, %v1087
      %v1152 = vmul.f32 %v992, %v1088
      %v1153 = vmul.f32 %v994, %v1089
      %v1154 = vmul.f32 %v996, %v1090
      %v1155 = vmul.f32 %v998, %v1091
      %v1156 = vmul.f32 %v1000, %v1092
      %v1157 = vmul.f32 %v1002, %v1093
      %v1158 = vmul.f32 %v1004, %v1094
      %v1159 = vmul.f32 %v1006, %v1095
      %v1160 = vmul.f32 %v1008, %v1096
      %v1161 = vmul.f32 %v1010, %v1097
      %v1162 = vmul.f32 %v1012, %v1098
      %v1163 = vmul.f32 %v1014, %v1099
      %v1164 = vmul.f32 %v1016, %v1100
      %v1165 = vmul.f32 %v1018, %v1101
      %v1166 = vmul.f32 %v1020, %v1102
      %v1167 = vmul.f32 %v1022, %v1103
      %v1168 = vmul.f32 %v1024, %v1104
      %v1169 = vmul.f32 %v1026, %v1105
      %v1170 = vmul.f32 %v1028, %v1106
      %v1171 = vmul.f32 %v1030, %v1107
      %v1172 = vmul.f32 %v1032, %v1108
      %v1173 = vmul.f32 %v1034, %v1109
      %v1174 = vmul.f32 %v1036, %v1110
      %v1175 = vmul.f32 %v1038, %v1111
      %v1176 = vmul.f32 %v1040, %v1112
      %v1177 = vmul.f32 %v1042, %v1113
      %v1178 = vmul.f32 %v1044, %v1114
      %v1179 = vmul.f32 %v1046, %v1115
      %v1180 = vmul.f32 %v1048, %v1116
      %v1181 = vmul.f32 %v1050, %v1117
      %v1182 = vmul.f32 %v1052, %v1118
      %v1183 = vmul.f32 %v1054, %v1119
      %v1184 = vmul.f32 %v1056, %v1120
      %v1185 = vmul.f32 %v611, %v1121
      %v1186 = vmul.f32 %v614, %v1122
      %v1187 = vmul.f32 %v619, %v1123
      %v1188 = vmul.f32 %v622, %v1124
      %v1189 = vmul.f32 %v627, %v1125
      %v1190 = vmul.f32 %v630, %v1126
      %v1191 = vmul.f32 %v635, %v1127
      %v1192 = vmul.f32 %v638, %v1128
      %v1193 = vmul.f32 %v643, %v1129
      %v1194 = vmul.f32 %v646, %v1130
      %v1195 = vmul.f32 %v651, %v1131
      %v1196 = vmul.f32 %v654, %v1132
      %v1197 = vmul.f32 %v659, %v1133
      %v1198 = vmul.f32 %v662, %v1134
      %v1199 = vmul.f32 %v667, %v1135
      %v1200 = vmul.f32 %v670, %v1136
      %v1201 = vmul.f32 %v675, %v1137
      %v1202 = vmul.f32 %v678, %v1138
      %v1203 = vmul.f32 %v683, %v1139
      %v1204 = vmul.f32 %v686, %v1140
      %v1205 = vmul.f32 %v691, %v1141
      %v1206 = vmul.f32 %v694, %v1142
      %v1207 = vmul.f32 %v699, %v1143
      %v1208 = vmul.f32 %v702, %v1144
      %v1209 = vmul.f32 %v707, %v1145
      %v1210 = vmul.f32 %v710, %v1146
      %v1211 = vmul.f32 %v715, %v1147
      %v1212 = vmul.f32 %v718, %v1148
      %v1213 = vmul.f32 %v723, %v1149
      %v1214 = vmul.f32 %v726, %v1150
      %v1215 = vmul.f32 %v731, %v1151
      %v1216 = vmul.f32 %v734, %v1152
      %v1217 = vmul.f32 %v739, %v1153
      %v1218 = vmul.f32 %v742, %v1154
      %v1219 = vmul.f32 %v747, %v1155
      %v1220 = vmul.f32 %v750, %v1156
      %v1221 = vmul.f32 %v755, %v1157
      %v1222 = vmul.f32 %v758, %v1158
      %v1223 = vmul.f32 %v763, %v1159
      %v1224 = vmul.f32 %v766, %v1160
      %v1225 = vmul.f32 %v771, %v1161
      %v1226 = vmul.f32 %v774, %v1162
      %v1227 = vmul.f32 %v779, %v1163
      %v1228 = vmul.f32 %v782, %v1164
      %v1229 = vmul.f32 %v787, %v1165
      %v1230 = vmul.f32 %v790, %v1166
      %v1231 = vmul.f32 %v795, %v1167
      %v1232 = vmul.f32 %v798, %v1168
      %v1233 = vmul.f32 %v803, %v1169
      %v1234 = vmul.f32 %v806, %v1170
      %v1235 = vmul.f32 %v811, %v1171
      %v1236 = vmul.f32 %v814, %v1172
      %v1237 = vmul.f32 %v819, %v1173
      %v1238 = vmul.f32 %v822, %v1174
      %v1239 = vmul.f32 %v827, %v1175
      %v1240 = vmul.f32 %v830, %v1176
      %v1241 = vmul.f32 %v835, %v1177
      %v1242 = vmul.f32 %v838, %v1178
      %v1243 = vmul.f32 %v843, %v1179
      %v1244 = vmul.f32 %v846, %v1180
      %v1245 = vmul.f32 %v851, %v1181
      %v1246 = vmul.f32 %v854, %v1182
      %v1247 = vmul.f32 %v859, %v1183
      %v1248 = vmul.f32 %v862, %v1184
      %v1249 = vadd.f32 %v1121, 2.0
      %v1250 = vadd.f32 %v1122, 2.0
      %v1251 = vadd.f32 %v1123, 2.0
      %v1252 = vadd.f32 %v1124, 2.0
      %v1253 = vadd.f32 %v1125, 2.0
      %v1254 = vadd.f32 %v1126, 2.0
      %v1255 = vadd.f32 %v1127, 2.0
      %v1256 = vadd.f32 %v1128, 2.0
      %v1257 = vadd.f32 %v1129, 2.0
      %v1258 = vadd.f32 %v1130, 2.0
      %v1259 = vadd.f32 %v1131, 2.0
      %v1260 = vadd.f32 %v1132, 2.0
      %v1261 = vadd.f32 %v1133, 2.0
      %v1262 = vadd.f32 %v1134, 2.0
      %v1263 = vadd.f32 %v1135, 2.0
      %v1264 = vadd.f32 %v1136, 2.0
      %v1265 = vadd.f32 %v1137, 2.0
      %v1266 = vadd.f32 %v1138, 2.0
      %v1267 = vadd.f32 %v1139, 2.0
      %v1268 = vadd.f32 %v1140, 2.0
      %v1269 = vadd.f32 %v1141, 2.0
      %v1270 = vadd.f32 %v1142, 2.0
      %v1271 = vadd.f32 %v1143, 2.0
      %v1272 = vadd.f32 %v1144, 2.0
      %v1273 = vadd.f32 %v1145, 2.0
      %v1274 = vadd.f32 %v1146, 2.0
      %v1275 = vadd.f32 %v1147, 2.0
      %v1276 = vadd.f32 %v1148, 2.0
      %v1277 = vadd.f32 %v1149, 2.0
      %v1278 = vadd.f32 %v1150, 2.0
      %v1279 = vadd.f32 %v1151, 2.0
      %v1280 = vadd.f32 %v1152, 2.0
      %v1281 = vadd.f32 %v1153, 2.0
      %v1282 = vadd.f32 %v1154, 2.0
      %v1283 = vadd.f32 %v1155, 2.0
      %v1284 = vadd.f32 %v1156, 2.0
      %v1285 = vadd.f32 %v1157, 2.0
      %v1286 = vadd.f32 %v1158, 2.0
      %v1287 = vadd.f32 %v1159, 2.0
      %v1288 = vadd.f32 %v1160, 2.0
      %v1289 = vadd.f32 %v1161, 2.0
      %v1290 = vadd.f32 %v1162, 2.0
      %v1291 = vadd.f32 %v1163, 2.0
      %v1292 = vadd.f32 %v1164, 2.0
      %v1293 = vadd.f32 %v1165, 2.0
      %v1294 = vadd.f32 %v1166, 2.0
      %v1295 = vadd.f32 %v1167, 2.0
      %v1296 = vadd.f32 %v1168, 2.0
      %v1297 = vadd.f32 %v1169, 2.0
      %v1298 = vadd.f32 %v1170, 2.0
      %v1299 = vadd.f32 %v1171, 2.0
      %v1300 = vadd.f32 %v1172, 2.0
      %v1301 = vadd.f32 %v1173, 2.0
      %v1302 = vadd.f32 %v1174, 2.0
      %v1303 = vadd.f32 %v1175, 2.0
      %v1304 = vadd.f32 %v1176, 2.0
      %v1305 = vadd.f32 %v1177, 2.0
      %v1306 = vadd.f32 %v1178, 2.0
      %v1307 = vadd.f32 %v1179, 2.0
      %v1308 = vadd.f32 %v1180, 2.0
      %v1309 = vadd.f32 %v1181, 2.0
      %v1310 = vadd.f32 %v1182, 2.0
      %v1311 = vadd.f32 %v1183, 2.0
      %v1312 = vadd.f32 %v1184, 2.0
      %v1313 = vrcp.pop %v1249
      %v1314 = vrcp.pop %v1250
      %v1315 = vrcp.pop %v1251
      %v1316 = vrcp.pop %v1252
      %v1317 = vrcp.pop %v1253
      %v1318 = vrcp.pop %v1254
      %v1319 = vrcp.pop %v1255
      %v1320 = vrcp.pop %v1256
      %v1321 = vrcp.pop %v1257
      %v1322 = vrcp.pop %v1258
      %v1323 = vrcp.pop %v1259
      %v1324 = vrcp.pop %v1260
      %v1325 = vrcp.pop %v1261
      %v1326 = vrcp.pop %v1262
      %v1327 = vrcp.pop %v1263
      %v1328 = vrcp.pop %v1264
      %v1329 = vrcp.pop %v1265
      %v1330 = vrcp.pop %v1266
      %v1331 = vrcp.pop %v1267
      %v1332 = vrcp.pop %v1268
      %v1333 = vrcp.pop %v1269
      %v1334 = vrcp.pop %v1270
      %v1335 = vrcp.pop %v1271
      %v1336 = vrcp.pop %v1272
      %v1337 = vrcp.pop %v1273
      %v1338 = vrcp.pop %v1274
      %v1339 = vrcp.pop %v1275
      %v1340 = vrcp.pop %v1276
      %v1341 = vrcp.pop %v1277
      %v1342 = vrcp.pop %v1278
      %v1343 = vrcp.pop %v1279
      %v1344 = vrcp.pop %v1280
      %v1345 = vrcp.pop %v1281
      %v1346 = vrcp.pop %v1282
      %v1347 = vrcp.pop %v1283
      %v1348 = vrcp.pop %v1284
      %v1349 = vrcp.pop %v1285
      %v1350 = vrcp.pop %v1286
      %v1351 = vrcp.pop %v1287
      %v1352 = vrcp.pop %v1288
      %v1353 = vrcp.pop %v1289
      %v1354 = vrcp.pop %v1290
      %v1355 = vrcp.pop %v1291
      %v1356 = vrcp.pop %v1292
      %v1357 = vrcp.pop %v1293
      %v1358 = vrcp.pop %v1294
      %v1359 = vrcp.pop %v1295
      %v1360 = vrcp.pop %v1296
      %v1361 = vrcp.pop %v1297
      %v1362 = vrcp.pop %v1298
      %v1363 = vrcp.pop %v1299
      %v1364 = vrcp.pop %v1300
      %v1365 = vrcp.pop %v1301
      %v1366 = vrcp.pop %v1302
      %v1367 = vrcp.pop %v1303
      %v1368 = vrcp.pop %v1304
      %v1369 = vrcp.pop %v1305
      %v1370 = vrcp.pop %v1306
      %v1371 = vrcp.pop %v1307
      %v1372 = vrcp.pop %v1308
      %v1373 = vrcp.pop %v1309
      %v1374 = vrcp.pop %v1310
      %v1375 = vrcp.pop %v1311
      %v1376 = vrcp.pop %v1312
      %v1377 = vmul.f32 %v1185, %v1313
      %v1378 = vmul.f32 %v1186, %v1314
      %v1379 = vmul.f32 %v1187, %v1315
      %v1380 = vmul.f32 %v1188, %v1316
      %v1381 = vmul.f32 %v1189, %v1317
      %v1382 = vmul.f32 %v1190, %v1318
      %v1383 = vmul.f32 %v1191, %v1319
      %v1384 = vmul.f32 %v1192, %v1320
      %v1385 = vmul.f32 %v1193, %v1321
      %v1386 = vmul.f32 %v1194, %v1322
      %v1387 = vmul.f32 %v1195, %v1323
      %v1388 = vmul.f32 %v1196, %v1324
      %v1389 = vmul.f32 %v1197, %v1325
      %v1390 = vmul.f32 %v1198, %v1326
      %v1391 = vmul.f32 %v1199, %v1327
      %v1392 = vmul.f32 %v1200, %v1328
      %v1393 = vmul.f32 %v1201, %v1329
      %v1394 = vmul.f32 %v1202, %v1330
      %v1395 = vmul.f32 %v1203, %v1331
      %v1396 = vmul.f32 %v1204, %v1332
      %v1397 = vmul.f32 %v1205, %v1333
      %v1398 = vmul.f32 %v1206, %v1334
      %v1399 = vmul.f32 %v1207, %v1335
      %v1400 = vmul.f32 %v1208, %v1336
      %v1401 = vmul.f32 %v1209, %v1337
      %v1402 = vmul.f32 %v1210, %v1338
      %v1403 = vmul.f32 %v1211, %v1339
      %v1404 = vmul.f32 %v1212, %v1340
      %v1405 = vmul.f32 %v1213, %v1341
      %v1406 = vmul.f32 %v1214, %v1342
      %v1407 = vmul.f32 %v1215, %v1343
      %v1408 = vmul.f32 %v1216, %v1344
      %v1409 = vmul.f32 %v1217, %v1345
      %v1410 = vmul.f32 %v1218, %v1346
      %v1411 = vmul.f32 %v1219, %v1347
      %v1412 = vmul.f32 %v1220, %v1348
      %v1413 = vmul.f32 %v1221, %v1349
      %v1414 = vmul.f32 %v1222, %v1350
      %v1415 = vmul.f32 %v1223, %v1351
      %v1416 = vmul.f32 %v1224, %v1352
      %v1417 = vmul.f32 %v1225, %v1353
      %v1418 = vmul.f32 %v1226, %v1354
      %v1419 = vmul.f32 %v1227, %v1355
      %v1420 = vmul.f32 %v1228, %v1356
      %v1421 = vmul.f32 %v1229, %v1357
      %v1422 = vmul.f32 %v1230, %v1358
      %v1423 = vmul.f32 %v1231, %v1359
      %v1424 = vmul.f32 %v1232, %v1360
      %v1425 = vmul.f32 %v1233, %v1361
      %v1426 = vmul.f32 %v1234, %v1362
      %v1427 = vmul.f32 %v1235, %v1363
      %v1428 = vmul.f32 %v1236, %v1364
      %v1429 = vmul.f32 %v1237, %v1365
      %v1430 = vmul.f32 %v1238, %v1366
      %v1431 = vmul.f32 %v1239, %v1367
      %v1432 = vmul.f32 %v1240, %v1368
      %v1433 = vmul.f32 %v1241, %v1369
      %v1434 = vmul.f32 %v1242, %v1370
      %v1435 = vmul.f32 %v1243, %v1371
      %v1436 = vmul.f32 %v1244, %v1372
      %v1437 = vmul.f32 %v1245, %v1373
      %v1438 = vmul.f32 %v1246, %v1374
      %v1439 = vmul.f32 %v1247, %v1375
      %v1440 = vmul.f32 %v1248, %v1376
      %v1441 = vpack.c.bf16 %v1378, %v1377
      %v1442 = vpack.c.bf16 %v1380, %v1379
      %v1443 = vpack.c.bf16 %v1382, %v1381
      %v1444 = vpack.c.bf16 %v1384, %v1383
      %v1445 = vpack.c.bf16 %v1386, %v1385
      %v1446 = vpack.c.bf16 %v1388, %v1387
      %v1447 = vpack.c.bf16 %v1390, %v1389
      %v1448 = vpack.c.bf16 %v1392, %v1391
      %v1449 = vpack.c.bf16 %v1394, %v1393
      %v1450 = vpack.c.bf16 %v1396, %v1395
      %v1451 = vpack.c.bf16 %v1398, %v1397
      %v1452 = vpack.c.bf16 %v1400, %v1399
      %v1453 = vpack.c.bf16 %v1402, %v1401
      %v1454 = vpack.c.bf16 %v1404, %v1403
      %v1455 = vpack.c.bf16 %v1406, %v1405
      %v1456 = vpack.c.bf16 %v1408, %v1407
      %v1457 = vpack.c.bf16 %v1410, %v1409
      %v1458 = vpack.c.bf16 %v1412, %v1411
      %v1459 = vpack.c.bf16 %v1414, %v1413
      %v1460 = vpack.c.bf16 %v1416, %v1415
      %v1461 = vpack.c.bf16 %v1418, %v1417
      %v1462 = vpack.c.bf16 %v1420, %v1419
      %v1463 = vpack.c.bf16 %v1422, %v1421
      %v1464 = vpack.c.bf16 %v1424, %v1423
      %v1465 = vpack.c.bf16 %v1426, %v1425
      %v1466 = vpack.c.bf16 %v1428, %v1427
      %v1467 = vpack.c.bf16 %v1430, %v1429
      %v1468 = vpack.c.bf16 %v1432, %v1431
      %v1469 = vpack.c.bf16 %v1434, %v1433
      %v1470 = vpack.c.bf16 %v1436, %v1435
      %v1471 = vpack.c.bf16 %v1438, %v1437
      %v1472 = vpack.c.bf16 %v1440, %v1439
      %v1505 = vunpack.c.l.b16 %v1441
      %v1506 = vunpack.c.h.b16 %v1441
      %v1507 = vunpack.c.l.b16 %v1442
      %v1508 = vunpack.c.h.b16 %v1442
      %v1509 = vunpack.c.l.b16 %v1443
      %v1510 = vunpack.c.h.b16 %v1443
      %v1511 = vunpack.c.l.b16 %v1444
      %v1512 = vunpack.c.h.b16 %v1444
      %v1513 = vunpack.c.l.b16 %v1445
      %v1514 = vunpack.c.h.b16 %v1445
      %v1515 = vunpack.c.l.b16 %v1446
      %v1516 = vunpack.c.h.b16 %v1446
      %v1517 = vunpack.c.l.b16 %v1447
      %v1518 = vunpack.c.h.b16 %v1447
      %v1519 = vunpack.c.l.b16 %v1448
      %v1520 = vunpack.c.h.b16 %v1448
      %v1521 = vunpack.c.l.b16 %v1449
      %v1522 = vunpack.c.h.b16 %v1449
      %v1523 = vunpack.c.l.b16 %v1450
      %v1524 = vunpack.c.h.b16 %v1450
      %v1525 = vunpack.c.l.b16 %v1451
      %v1526 = vunpack.c.h.b16 %v1451
      %v1527 = vunpack.c.l.b16 %v1452
      %v1528 = vunpack.c.h.b16 %v1452
      %v1529 = vunpack.c.l.b16 %v1453
      %v1530 = vunpack.c.h.b16 %v1453
      %v1531 = vunpack.c.l.b16 %v1454
      %v1532 = vunpack.c.h.b16 %v1454
      %v1533 = vunpack.c.l.b16 %v1455
      %v1534 = vunpack.c.h.b16 %v1455
      %v1535 = vunpack.c.l.b16 %v1456
      %v1536 = vunpack.c.h.b16 %v1456
      %v1537 = vunpack.c.l.b16 %v1457
      %v1538 = vunpack.c.h.b16 %v1457
      %v1539 = vunpack.c.l.b16 %v1458
      %v1540 = vunpack.c.h.b16 %v1458
      %v1541 = vunpack.c.l.b16 %v1459
      %v1542 = vunpack.c.h.b16 %v1459
      %v1543 = vunpack.c.l.b16 %v1460
      %v1544 = vunpack.c.h.b16 %v1460
      %v1545 = vunpack.c.l.b16 %v1461
      %v1546 = vunpack.c.h.b16 %v1461
      %v1547 = vunpack.c.l.b16 %v1462
      %v1548 = vunpack.c.h.b16 %v1462
      %v1549 = vunpack.c.l.b16 %v1463
      %v1550 = vunpack.c.h.b16 %v1463
      %v1551 = vunpack.c.l.b16 %v1464
      %v1552 = vunpack.c.h.b16 %v1464
      %v1553 = vunpack.c.l.b16 %v1465
      %v1554 = vunpack.c.h.b16 %v1465
      %v1555 = vunpack.c.l.b16 %v1466
      %v1556 = vunpack.c.h.b16 %v1466
      %v1557 = vunpack.c.l.b16 %v1467
      %v1558 = vunpack.c.h.b16 %v1467
      %v1559 = vunpack.c.l.b16 %v1468
      %v1560 = vunpack.c.h.b16 %v1468
      %v1561 = vunpack.c.l.b16 %v1469
      %v1562 = vunpack.c.h.b16 %v1469
      %v1563 = vunpack.c.l.b16 %v1470
      %v1564 = vunpack.c.h.b16 %v1470
      %v1565 = vunpack.c.l.b16 %v1471
      %v1566 = vunpack.c.h.b16 %v1471
      %v1567 = vunpack.c.l.b16 %v1472
      %v1568 = vunpack.c.h.b16 %v1472
      %v1569 = vpack.c.b16 %v1505, %v1505
      %v1570 = vpack.c.b16 %v1506, %v1506
      %v1571 = vpack.c.b16 %v1507, %v1507
      %v1572 = vpack.c.b16 %v1508, %v1508
      %v1573 = vpack.c.b16 %v1509, %v1509
      %v1574 = vpack.c.b16 %v1510, %v1510
      %v1575 = vpack.c.b16 %v1511, %v1511
      %v1576 = vpack.c.b16 %v1512, %v1512
      %v1577 = vpack.c.b16 %v1513, %v1513
      %v1578 = vpack.c.b16 %v1514, %v1514
      %v1579 = vpack.c.b16 %v1515, %v1515
      %v1580 = vpack.c.b16 %v1516, %v1516
      %v1581 = vpack.c.b16 %v1517, %v1517
      %v1582 = vpack.c.b16 %v1518, %v1518
      %v1583 = vpack.c.b16 %v1519, %v1519
      %v1584 = vpack.c.b16 %v1520, %v1520
      %v1585 = vpack.c.b16 %v1521, %v1521
      %v1586 = vpack.c.b16 %v1522, %v1522
      %v1587 = vpack.c.b16 %v1523, %v1523
      %v1588 = vpack.c.b16 %v1524, %v1524
      %v1589 = vpack.c.b16 %v1525, %v1525
      %v1590 = vpack.c.b16 %v1526, %v1526
      %v1591 = vpack.c.b16 %v1527, %v1527
      %v1592 = vpack.c.b16 %v1528, %v1528
      %v1593 = vpack.c.b16 %v1529, %v1529
      %v1594 = vpack.c.b16 %v1530, %v1530
      %v1595 = vpack.c.b16 %v1531, %v1531
      %v1596 = vpack.c.b16 %v1532, %v1532
      %v1597 = vpack.c.b16 %v1533, %v1533
      %v1598 = vpack.c.b16 %v1534, %v1534
      %v1599 = vpack.c.b16 %v1535, %v1535
      %v1600 = vpack.c.b16 %v1536, %v1536
      %v1601 = vpack.c.b16 %v1537, %v1537
      %v1602 = vpack.c.b16 %v1538, %v1538
      %v1603 = vpack.c.b16 %v1539, %v1539
      %v1604 = vpack.c.b16 %v1540, %v1540
      %v1605 = vpack.c.b16 %v1541, %v1541
      %v1606 = vpack.c.b16 %v1542, %v1542
      %v1607 = vpack.c.b16 %v1543, %v1543
      %v1608 = vpack.c.b16 %v1544, %v1544
      %v1609 = vpack.c.b16 %v1545, %v1545
      %v1610 = vpack.c.b16 %v1546, %v1546
      %v1611 = vpack.c.b16 %v1547, %v1547
      %v1612 = vpack.c.b16 %v1548, %v1548
      %v1613 = vpack.c.b16 %v1549, %v1549
      %v1614 = vpack.c.b16 %v1550, %v1550
      %v1615 = vpack.c.b16 %v1551, %v1551
      %v1616 = vpack.c.b16 %v1552, %v1552
      %v1617 = vpack.c.b16 %v1553, %v1553
      %v1618 = vpack.c.b16 %v1554, %v1554
      %v1619 = vpack.c.b16 %v1555, %v1555
      %v1620 = vpack.c.b16 %v1556, %v1556
      %v1621 = vpack.c.b16 %v1557, %v1557
      %v1622 = vpack.c.b16 %v1558, %v1558
      %v1623 = vpack.c.b16 %v1559, %v1559
      %v1624 = vpack.c.b16 %v1560, %v1560
      %v1625 = vpack.c.b16 %v1561, %v1561
      %v1626 = vpack.c.b16 %v1562, %v1562
      %v1627 = vpack.c.b16 %v1563, %v1563
      %v1628 = vpack.c.b16 %v1564, %v1564
      %v1629 = vpack.c.b16 %v1565, %v1565
      %v1630 = vpack.c.b16 %v1566, %v1566
      %v1631 = vpack.c.b16 %v1567, %v1567
      %v1632 = vpack.c.b16 %v1568, %v1568
      %vm1697 = vcmask 257024
      %1698 = vst.msk [vmem:[%s223] sm:$0xf] %vm1697, %v1569
      %1699 = vst.msk [vmem:[%s223 + $0x4] sm:$0xf] %vm1697, %v1570
      %1700 = vst.msk [vmem:[%s223 + $0x8] sm:$0xf] %vm1697, %v1571
      %1701 = vst.msk [vmem:[%s223 + $0xc] sm:$0xf] %vm1697, %v1572
      %1702 = vst.msk [vmem:[%s223 + $0x10] sm:$0xf] %vm1697, %v1573
      %1703 = vst.msk [vmem:[%s223 + $0x14] sm:$0xf] %vm1697, %v1574
      %1704 = vst.msk [vmem:[%s223 + $0x18] sm:$0xf] %vm1697, %v1575
      %1705 = vst.msk [vmem:[%s223 + $0x1c] sm:$0xf] %vm1697, %v1576
      %1706 = vst.msk [vmem:[%s223 + $0x20] sm:$0xf] %vm1697, %v1577
      %1707 = vst.msk [vmem:[%s223 + $0x24] sm:$0xf] %vm1697, %v1578
      %1708 = vst.msk [vmem:[%s223 + $0x28] sm:$0xf] %vm1697, %v1579
      %1709 = vst.msk [vmem:[%s223 + $0x2c] sm:$0xf] %vm1697, %v1580
      %1710 = vst.msk [vmem:[%s223 + $0x30] sm:$0xf] %vm1697, %v1581
      %1711 = vst.msk [vmem:[%s223 + $0x34] sm:$0xf] %vm1697, %v1582
      %1712 = vst.msk [vmem:[%s223 + $0x38] sm:$0xf] %vm1697, %v1583
      %1713 = vst.msk [vmem:[%s223 + $0x3c] sm:$0xf] %vm1697, %v1584
      %1714 = vst.msk [vmem:[%s223 + $0x40] sm:$0xf] %vm1697, %v1585
      %1715 = vst.msk [vmem:[%s223 + $0x44] sm:$0xf] %vm1697, %v1586
      %1716 = vst.msk [vmem:[%s223 + $0x48] sm:$0xf] %vm1697, %v1587
      %1717 = vst.msk [vmem:[%s223 + $0x4c] sm:$0xf] %vm1697, %v1588
      %1718 = vst.msk [vmem:[%s223 + $0x50] sm:$0xf] %vm1697, %v1589
      %1719 = vst.msk [vmem:[%s223 + $0x54] sm:$0xf] %vm1697, %v1590
      %1720 = vst.msk [vmem:[%s223 + $0x58] sm:$0xf] %vm1697, %v1591
      %1721 = vst.msk [vmem:[%s223 + $0x5c] sm:$0xf] %vm1697, %v1592
      %1722 = vst.msk [vmem:[%s223 + $0x60] sm:$0xf] %vm1697, %v1593
      %1723 = vst.msk [vmem:[%s223 + $0x64] sm:$0xf] %vm1697, %v1594
      %1724 = vst.msk [vmem:[%s223 + $0x68] sm:$0xf] %vm1697, %v1595
      %1725 = vst.msk [vmem:[%s223 + $0x6c] sm:$0xf] %vm1697, %v1596
      %1726 = vst.msk [vmem:[%s223 + $0x70] sm:$0xf] %vm1697, %v1597
      %1727 = vst.msk [vmem:[%s223 + $0x74] sm:$0xf] %vm1697, %v1598
      %1728 = vst.msk [vmem:[%s223 + $0x78] sm:$0xf] %vm1697, %v1599
      %1729 = vst.msk [vmem:[%s223 + $0x7c] sm:$0xf] %vm1697, %v1600
      %1730 = vst.msk [vmem:[%s223 + $0x80] sm:$0xf] %vm1697, %v1601
      %1731 = vst.msk [vmem:[%s223 + $0x84] sm:$0xf] %vm1697, %v1602
      %1732 = vst.msk [vmem:[%s223 + $0x88] sm:$0xf] %vm1697, %v1603
      %1733 = vst.msk [vmem:[%s223 + $0x8c] sm:$0xf] %vm1697, %v1604
      %1734 = vst.msk [vmem:[%s223 + $0x90] sm:$0xf] %vm1697, %v1605
      %1735 = vst.msk [vmem:[%s223 + $0x94] sm:$0xf] %vm1697, %v1606
      %1736 = vst.msk [vmem:[%s223 + $0x98] sm:$0xf] %vm1697, %v1607
      %1737 = vst.msk [vmem:[%s223 + $0x9c] sm:$0xf] %vm1697, %v1608
      %1738 = vst.msk [vmem:[%s223 + $0xa0] sm:$0xf] %vm1697, %v1609
      %1739 = vst.msk [vmem:[%s223 + $0xa4] sm:$0xf] %vm1697, %v1610
      %1740 = vst.msk [vmem:[%s223 + $0xa8] sm:$0xf] %vm1697, %v1611
      %1741 = vst.msk [vmem:[%s223 + $0xac] sm:$0xf] %vm1697, %v1612
      %1742 = vst.msk [vmem:[%s223 + $0xb0] sm:$0xf] %vm1697, %v1613
      %1743 = vst.msk [vmem:[%s223 + $0xb4] sm:$0xf] %vm1697, %v1614
      %1744 = vst.msk [vmem:[%s223 + $0xb8] sm:$0xf] %vm1697, %v1615
      %1745 = vst.msk [vmem:[%s223 + $0xbc] sm:$0xf] %vm1697, %v1616
      %1746 = vst.msk [vmem:[%s223 + $0xc0] sm:$0xf] %vm1697, %v1617
      %1747 = vst.msk [vmem:[%s223 + $0xc4] sm:$0xf] %vm1697, %v1618
      %1748 = vst.msk [vmem:[%s223 + $0xc8] sm:$0xf] %vm1697, %v1619
      %1749 = vst.msk [vmem:[%s223 + $0xcc] sm:$0xf] %vm1697, %v1620
      %1750 = vst.msk [vmem:[%s223 + $0xd0] sm:$0xf] %vm1697, %v1621
      %1751 = vst.msk [vmem:[%s223 + $0xd4] sm:$0xf] %vm1697, %v1622
      %1752 = vst.msk [vmem:[%s223 + $0xd8] sm:$0xf] %vm1697, %v1623
      %1753 = vst.msk [vmem:[%s223 + $0xdc] sm:$0xf] %vm1697, %v1624
      %1754 = vst.msk [vmem:[%s223 + $0xe0] sm:$0xf] %vm1697, %v1625
      %1755 = vst.msk [vmem:[%s223 + $0xe4] sm:$0xf] %vm1697, %v1626
      %1756 = vst.msk [vmem:[%s223 + $0xe8] sm:$0xf] %vm1697, %v1627
      %1757 = vst.msk [vmem:[%s223 + $0xec] sm:$0xf] %vm1697, %v1628
      %1758 = vst.msk [vmem:[%s223 + $0xf0] sm:$0xf] %vm1697, %v1629
      %1759 = vst.msk [vmem:[%s223 + $0xf4] sm:$0xf] %vm1697, %v1630
      %1760 = vst.msk [vmem:[%s223 + $0xf8] sm:$0xf] %vm1697, %v1631
      %1761 = vst.msk [vmem:[%s223 + $0xfc] sm:$0xf] %vm1697, %v1632
      %s1762 = smul.u32 64, %s18
      %p1763 = scmp.lt.s32.totalorder %s1762, 1023
      %s1764 = scalar_select %p1763, %s1762, 1023
      %p1765 = scmp.lt.s32.totalorder %s19, 0
      %s1766 = scalar_select %p1765, %s19, 0
      %s1767 = sadd.s32 %s1766, %s1764
      %s1768 = smul.addr %s1767, 4
      %s1769 = scalar_lea.vmem %s3, %s1768
      // Predicated region
      $region33: #{matmul_bias_act.1} parent=31 // pred_check
        %p1770 = pneg %p124
      $region34: #{matmul_bias_act.1} parent=31 // pred_check_branch
        %1772 = sbr.rel (%p1770) target = $region36
      $region35: #{matmul_bias_act.1} parent=31 // pred_region
        %s1773 = smul.u32 64, %s18
      $region36: #{matmul_bias_act.1} parent=31 // pred_fallthru
        _
    $region32: #{matmul_bias_act.1} parent=5 // pred_fallthru
      _
    %p1774 = scmp.le.s32.totalorder 2, %s9
    // Predicated region
    $region37: #{matmul_bias_act.1} parent=5 // pred_check
      %p1775 = pneg %p1774
    $region38: #{matmul_bias_act.1} parent=5 // pred_check_branch
      %1777 = sbr.rel (%p1775) target = $region40
    $region39: #{matmul_bias_act.1} parent=5 // pred_region
      %s1778 = ssub.s32 %s9, 2
      // Predicated region
      $region41: #{matmul_bias_act.1} parent=39 // pred_check
        %p1779 = pneg %p130
      $region42: #{matmul_bias_act.1} parent=39 // pred_check_branch
        %1781 = sbr.rel (%p1779) target = $region44
      $region43: #{matmul_bias_act.1} parent=39 // pred_region
        %s1782 = smul.u32 64, %s20
        %p1783 = scmp.lt.s32.totalorder %s1782, 1023
        %s1784 = scalar_select %p1783, %s1782, 1023
        %p1785 = scmp.lt.s32.totalorder %s21, 0
        %s1786 = scalar_select %p1785, %s21, 0
        %s1787 = sadd.s32 %s1786, %s1784
        %s1788 = smul.addr %s1787, 4
        %s1789 = scalar_lea.vmem %s3, %s1788
      $region44: #{matmul_bias_act.1} parent=39 // pred_fallthru
        _
    $region40: #{matmul_bias_act.1} parent=5 // pred_fallthru
      _
  $region6: #{matmul_bias_act.1} parent=0 // loop_footer
    %s13 = sadd.s32 1, %s9
  $region7: #{matmul_bias_act.1} parent=0 // loop_footer_branch
    %8 = sbr.rel target = $region3
  $region8: #{matmul_bias_act.1} parent=0 // loop_exit
    _

</llo_original>
